<compile_context>
chip_gen: v5e
topology: v5e:2x2
jax: 0.10.0
libtpu: 0.0.40
codegen_flags: <defaults>
</compile_context>

<pallas_src>
import jax
import jax.numpy as jnp
from jax.experimental import pallas as pl
from jax.experimental.pallas import tpu as pltpu


def _round_up(a, b):
    return (a + b - 1) // b * b


def textcnn_kernel(x_ref, tmask_ref, wconv_ref, bconv_ref, wfc_ref, bfc_ref,
                   out_ref):
    """One batch tile of the fused TextCNN forward.

    x_ref     : (bt, Lp, D)   raw (time-padded) embeddings, bf16
    tmask_ref : (Tp, Np)      1.0 where a time step is valid for a channel (f32)
    wconv_ref : (Kmax*D, Np)  all conv branches fused, zero-padded taps (bf16)
    bconv_ref : (1, Np)       fused conv bias (f32)
    wfc_ref   : (Np, Cp)      FC weight, lane-dense padded (f32)
    bfc_ref   : (1, Cp)       FC bias, padded (f32)
    out_ref   : (bt, Cp)      padded logits (f32), dense (8,128) stores
    """
    bt, lp, d = x_ref.shape
    tp, np_ = tmask_ref.shape
    kmax = wconv_ref.shape[0] // d

    # In-kernel im2col-as-accumulation: each tap k is one MXU matmul
    # (bt*Tp, D) @ (D, Np) into a shared f32 accumulator.  x is read from HBM
    # exactly once; the k-shifted sublane slices are cheap VMEM-local moves.
    conv = jnp.zeros((bt * tp, np_), jnp.float32)
    for k in range(kmax):
        xk = x_ref[:, pl.ds(k, tp), :].reshape(bt * tp, d)
        conv = conv + jnp.dot(xk, wconv_ref[pl.ds(k * d, d), :],
                              preferred_element_type=jnp.float32)

    # Bias + ReLU in f32, then zero invalid time steps (Tp sublane padding and
    # windows running past L for each branch).  ReLU output >= 0, so zeroing is
    # exactly equivalent to excluding those steps from the max-pool.  The
    # (Tp, Np) mask is a single broadcast constant (not tiled per batch row).
    act = jnp.maximum(conv + bconv_ref[...], 0.0)
    act = act.reshape(bt, tp, np_) * tmask_ref[...]

    # Max-pool over time -> (bt, Np); branches are already "concatenated" by
    # construction of the fused channel axis (no lane-axis concat needed).
    pooled = jnp.max(act, axis=1)

    # TODO(synk): training-mode dropout (random mask + 1/(1-p) scaling) not
    # implemented; inference dropout is identity.

    # Single lane-dense FC matmul + bias on the padded feature/class dims.
    logits = jnp.dot(pooled, wfc_ref[...],
                     preferred_element_type=jnp.float32) + bfc_ref[...]
    out_ref[...] = logits.astype(out_ref.dtype)


def textcnn_forward(x, conv_ws, conv_bs, wfc, bfc, ks,
                    compute_dtype=jnp.bfloat16):
    """TextCNN forward.

    x        : (B, L, D) f32
    conv_ws  : list of (K, D, Cout)   (PyTorch conv weight (Cout,1,K,D) pre-transposed)
    conv_bs  : list of (1, Cout)
    wfc      : (len(ks)*Cout, class_num)   (PyTorch fc weight pre-transposed)
    bfc      : (1, class_num)
    """
    B, L, D = x.shape
    Cout = conv_ws[0].shape[-1]
    class_num = wfc.shape[1]
    kmin, kmax = min(ks), max(ks)
    assert L >= kmax, "sequence length must be >= the largest conv kernel"

    LANE, SUB = 128, 8
    T = L - kmin + 1                   # longest conv output length
    Tp = _round_up(T, SUB)             # sublane-aligned time tile
    Lp = Tp + kmax - 1                 # time extent the kernel reads (>= L)
    KD = kmax * D                      # fused contraction dim
    NC = len(ks) * Cout                # real fused conv channels
    Np = _round_up(NC, LANE)           # lane-dense fused channel dim
    Cp = _round_up(class_num, LANE)    # lane-dense padded class dim

    # Batch tile: the kernel is grid-step-overhead bound at small tiles, so use
    # a big tile.  Multiple of 16 => conv matmul M = block_b*Tp is a multiple of
    # 256 (v6e/v7x MXU tile); sized to ~B/4 so large batches still get >= 4 grid
    # steps (both v7x TensorCores busy + double-buffered DMA); capped at 512 so
    # the per-step working set (~10-15 MiB here) fits v7x's 64 MiB VMEM easily.
    block_b = max(16, min(512, _round_up(-(-B // 4), 16)))
    Bp = _round_up(B, block_b)

    # Cast x to bf16 BEFORE padding: the only HBM input slab is bf16 and the
    # im2col happens inside the kernel (no duplicated-tap copy in HBM).
    x_pad = jnp.pad(x.astype(compute_dtype),
                    ((0, Bp - B), (0, Lp - L), (0, 0)))

    # Fuse all conv branches into one (Kmax*D, Np) weight + (1, Np) bias, and
    # build the shared per-channel valid-time mask (Tp, Np).
    wconv = jnp.zeros((KD, Np), jnp.float32)
    bconv = jnp.zeros((1, Np), jnp.float32)
    tlim = jnp.zeros((Np,), jnp.int32)
    for j, (k, w, b) in enumerate(zip(ks, conv_ws, conv_bs)):
        c0 = j * Cout
        wconv = wconv.at[:k * D, c0:c0 + Cout].set(w.reshape(k * D, Cout))
        bconv = bconv.at[:, c0:c0 + Cout].set(b.reshape(1, Cout))
        tlim = tlim.at[c0:c0 + Cout].set(L - k + 1)
    tmask = (jnp.arange(Tp)[:, None] < tlim[None, :]).astype(jnp.float32)

    # Lane-dense padded FC params (zero rows/cols in the padding).
    wfc_p = jnp.zeros((Np, Cp), jnp.float32).at[:NC, :class_num].set(wfc)
    bfc_p = jnp.zeros((1, Cp), jnp.float32).at[:, :class_num].set(bfc)

    wconv = wconv.astype(compute_dtype)   # bf16 MXU operand; bias stays f32

    out = pl.pallas_call(
        textcnn_kernel,
        out_shape=jax.ShapeDtypeStruct((Bp, Cp), jnp.float32),
        grid=(Bp // block_b,),
        in_specs=[
            pl.BlockSpec((block_b, Lp, D), lambda i: (i, 0, 0)),
            pl.BlockSpec((Tp, Np), lambda i: (0, 0)),
            pl.BlockSpec((KD, Np), lambda i: (0, 0)),
            pl.BlockSpec((1, Np), lambda i: (0, 0)),
            pl.BlockSpec((Np, Cp), lambda i: (0, 0)),
            pl.BlockSpec((1, Cp), lambda i: (0, 0)),
        ],
        out_specs=pl.BlockSpec((block_b, Cp), lambda i: (i, 0)),
        compiler_params=pltpu.CompilerParams(
            dimension_semantics=("parallel",),
            vmem_limit_bytes=32 * 1024 * 1024),
    )(x_pad, tmask, wconv, bconv, wfc_p, bfc_p)

    return out[:B, :class_num]


def textcnn_ref(x, conv_ws, conv_bs, wfc, bfc, ks):
    """Pure-JAX reference mirroring the PyTorch NCHW conv path (f32-exact)."""
    xi = x[:, None, :, :]                                    # (B, 1, L, D)
    pooled = []
    for w, b in zip(conv_ws, conv_bs):
        w_oihw = jnp.transpose(w, (2, 0, 1))[:, None, :, :]  # (Cout, 1, K, D)
        y = jax.lax.conv_general_dilated(
            xi, w_oihw, window_strides=(1, 1), padding="VALID",
            dimension_numbers=("NCHW", "OIHW", "NCHW"),
            precision=jax.lax.Precision.HIGHEST)             # (B, Cout, T, 1)
        y = y + b[0][None, :, None, None]
        y = jax.nn.relu(y)[..., 0]                           # (B, Cout, T)
        pooled.append(jnp.max(y, axis=-1))                   # (B, Cout)
    feat = jnp.concatenate(pooled, axis=1)
    return jnp.dot(feat, wfc, precision=jax.lax.Precision.HIGHEST) + bfc


if __name__ == "__main__":
    # small config consistent with the module:
    # emb_dim=32, kernel_num=8, kernels=(3,4,5), class_num=4, seq_len=16, batch=2
    B, L, D = 2, 16, 32
    Cout = 8
    Ks = (3, 4, 5)
    class_num = 4

    key = jax.random.PRNGKey(0)
    keys = jax.random.split(key, 2 * len(Ks) + 3)

    x = jax.random.normal(keys[0], (B, L, D), dtype=jnp.float32)
    conv_ws, conv_bs = [], []
    for i, K in enumerate(Ks):
        conv_ws.append(0.1 * jax.random.normal(keys[1 + 2 * i], (K, D, Cout),
                                               dtype=jnp.float32))
        conv_bs.append(0.1 * jax.random.normal(keys[2 + 2 * i], (1, Cout),
                                               dtype=jnp.float32))
    wfc = 0.1 * jax.random.normal(keys[-2], (len(Ks) * Cout, class_num),
                                  dtype=jnp.float32)
    bfc = 0.1 * jax.random.normal(keys[-1], (1, class_num), dtype=jnp.float32)

    out = textcnn_forward(x, conv_ws, conv_bs, wfc, bfc, Ks)
    out = jax.block_until_ready(out)
    assert out.shape == (B, class_num), out.shape

    # Reference is computed from the same bf16-rounded MXU inputs (x and conv
    # weights) with f32 accumulation, so the check validates kernel math rather
    # than bf16 input quantization.
    bf = lambda a: a.astype(jnp.bfloat16).astype(jnp.float32)
    ref = textcnn_ref(bf(x), [bf(w) for w in conv_ws], conv_bs, wfc, bfc, Ks)

    if not jnp.allclose(out, ref, atol=2e-3, rtol=2e-3):
        raise AssertionError(f"mismatch:\nkernel={out}\nref={ref}")
    print("KERNEL_OK")
</pallas_src>

<mosaic_0001>
module attributes {stable_mosaic.version = 11 : i64} {
  func.func @textcnn_kernel(%arg0: i32, %arg1: memref<16x20x32xbf16, #tpu.memory_space<vmem>>, %arg2: memref<16x128xf32, #tpu.memory_space<vmem>>, %arg3: memref<160x128xbf16, #tpu.memory_space<vmem>>, %arg4: memref<1x128xf32, #tpu.memory_space<vmem>>, %arg5: memref<128x128xf32, #tpu.memory_space<vmem>>, %arg6: memref<1x128xf32, #tpu.memory_space<vmem>>, %arg7: memref<16x128xf32, #tpu.memory_space<vmem>>) attributes {dimension_semantics = [#tpu.dimension_semantics<parallel>], iteration_bounds = array<i64: 1>, scalar_prefetch = 0 : i64, scratch_operands = 0 : i64, tpu.core_type = #tpu.core_type<tc>, window_params = [{transform_indices = @transform_0, window_bounds = array<i64: 16, 20, 32>}, {pipeline_mode = #tpu.pipeline_mode<synchronous>, transform_indices = @transform_1, window_bounds = array<i64: 16, 128>}, {pipeline_mode = #tpu.pipeline_mode<synchronous>, transform_indices = @transform_2, window_bounds = array<i64: 160, 128>}, {pipeline_mode = #tpu.pipeline_mode<synchronous>, transform_indices = @transform_3, window_bounds = array<i64: 1, 128>}, {pipeline_mode = #tpu.pipeline_mode<synchronous>, transform_indices = @transform_4, window_bounds = array<i64: 128, 128>}, {pipeline_mode = #tpu.pipeline_mode<synchronous>, transform_indices = @transform_5, window_bounds = array<i64: 1, 128>}, {transform_indices = @transform_6, window_bounds = array<i64: 16, 128>}]} {
    %cst = arith.constant 0.000000e+00 : f32
    %0 = vector.broadcast %cst : f32 to vector<256x128xf32>
    %c0 = arith.constant 0 : index
    %c0_0 = arith.constant 0 : index
    %c0_1 = arith.constant 0 : index
    %1 = vector.load %arg1[%c0, %c0_0, %c0_1] : memref<16x20x32xbf16, #tpu.memory_space<vmem>>, vector<16x16x32xbf16>
    %2 = vector.shape_cast %1 : vector<16x16x32xbf16> to vector<256x32xbf16>
    %c0_2 = arith.constant 0 : index
    %c0_3 = arith.constant 0 : index
    %3 = vector.load %arg3[%c0_2, %c0_3] : memref<160x128xbf16, #tpu.memory_space<vmem>>, vector<32x128xbf16>
    %cst_4 = arith.constant dense<0.000000e+00> : vector<256x128xf32>
    %4 = tpu.matmul %2, %3, %cst_4 {dimension_numbers = #tpu.dot_dimension_numbers<[1], [0], [0], [1], [0, 0, 1, 1], [], []>} : vector<256x32xbf16>, vector<32x128xbf16>, vector<256x128xf32> -> vector<256x128xf32>
    %5 = arith.addf %0, %4 : vector<256x128xf32>
    %c0_5 = arith.constant 0 : index
    %c1 = arith.constant 1 : index
    %c0_6 = arith.constant 0 : index
    %6 = vector.load %arg1[%c0_5, %c1, %c0_6] : memref<16x20x32xbf16, #tpu.memory_space<vmem>>, vector<16x16x32xbf16>
    %7 = vector.shape_cast %6 : vector<16x16x32xbf16> to vector<256x32xbf16>
    %c32 = arith.constant 32 : index
    %c0_7 = arith.constant 0 : index
    %8 = vector.load %arg3[%c32, %c0_7] : memref<160x128xbf16, #tpu.memory_space<vmem>>, vector<32x128xbf16>
    %cst_8 = arith.constant dense<0.000000e+00> : vector<256x128xf32>
    %9 = tpu.matmul %7, %8, %cst_8 {dimension_numbers = #tpu.dot_dimension_numbers<[1], [0], [0], [1], [0, 0, 1, 1], [], []>} : vector<256x32xbf16>, vector<32x128xbf16>, vector<256x128xf32> -> vector<256x128xf32>
    %10 = arith.addf %5, %9 : vector<256x128xf32>
    %c0_9 = arith.constant 0 : index
    %c2 = arith.constant 2 : index
    %c0_10 = arith.constant 0 : index
    %11 = vector.load %arg1[%c0_9, %c2, %c0_10] : memref<16x20x32xbf16, #tpu.memory_space<vmem>>, vector<16x16x32xbf16>
    %12 = vector.shape_cast %11 : vector<16x16x32xbf16> to vector<256x32xbf16>
    %c64 = arith.constant 64 : index
    %c0_11 = arith.constant 0 : index
    %13 = vector.load %arg3[%c64, %c0_11] : memref<160x128xbf16, #tpu.memory_space<vmem>>, vector<32x128xbf16>
    %cst_12 = arith.constant dense<0.000000e+00> : vector<256x128xf32>
    %14 = tpu.matmul %12, %13, %cst_12 {dimension_numbers = #tpu.dot_dimension_numbers<[1], [0], [0], [1], [0, 0, 1, 1], [], []>} : vector<256x32xbf16>, vector<32x128xbf16>, vector<256x128xf32> -> vector<256x128xf32>
    %15 = arith.addf %10, %14 : vector<256x128xf32>
    %c0_13 = arith.constant 0 : index
    %c3 = arith.constant 3 : index
    %c0_14 = arith.constant 0 : index
    %16 = vector.load %arg1[%c0_13, %c3, %c0_14] : memref<16x20x32xbf16, #tpu.memory_space<vmem>>, vector<16x16x32xbf16>
    %17 = vector.shape_cast %16 : vector<16x16x32xbf16> to vector<256x32xbf16>
    %c96 = arith.constant 96 : index
    %c0_15 = arith.constant 0 : index
    %18 = vector.load %arg3[%c96, %c0_15] : memref<160x128xbf16, #tpu.memory_space<vmem>>, vector<32x128xbf16>
    %cst_16 = arith.constant dense<0.000000e+00> : vector<256x128xf32>
    %19 = tpu.matmul %17, %18, %cst_16 {dimension_numbers = #tpu.dot_dimension_numbers<[1], [0], [0], [1], [0, 0, 1, 1], [], []>} : vector<256x32xbf16>, vector<32x128xbf16>, vector<256x128xf32> -> vector<256x128xf32>
    %20 = arith.addf %15, %19 : vector<256x128xf32>
    %c0_17 = arith.constant 0 : index
    %c4 = arith.constant 4 : index
    %c0_18 = arith.constant 0 : index
    %21 = vector.load %arg1[%c0_17, %c4, %c0_18] : memref<16x20x32xbf16, #tpu.memory_space<vmem>>, vector<16x16x32xbf16>
    %22 = vector.shape_cast %21 : vector<16x16x32xbf16> to vector<256x32xbf16>
    %c128 = arith.constant 128 : index
    %c0_19 = arith.constant 0 : index
    %23 = vector.load %arg3[%c128, %c0_19] : memref<160x128xbf16, #tpu.memory_space<vmem>>, vector<32x128xbf16>
    %cst_20 = arith.constant dense<0.000000e+00> : vector<256x128xf32>
    %24 = tpu.matmul %22, %23, %cst_20 {dimension_numbers = #tpu.dot_dimension_numbers<[1], [0], [0], [1], [0, 0, 1, 1], [], []>} : vector<256x32xbf16>, vector<32x128xbf16>, vector<256x128xf32> -> vector<256x128xf32>
    %25 = arith.addf %20, %24 : vector<256x128xf32>
    %c0_21 = arith.constant 0 : index
    %c0_22 = arith.constant 0 : index
    %26 = vector.load %arg4[%c0_21, %c0_22] : memref<1x128xf32, #tpu.memory_space<vmem>>, vector<1x128xf32>
    %27 = vector.broadcast %26 : vector<1x128xf32> to vector<256x128xf32>
    %28 = arith.addf %25, %27 : vector<256x128xf32>
    %cst_23 = arith.constant 0.000000e+00 : f32
    %29 = vector.broadcast %cst_23 : f32 to vector<256x128xf32>
    %30 = arith.maximumf %28, %29 : vector<256x128xf32>
    %31 = vector.shape_cast %30 : vector<256x128xf32> to vector<16x16x128xf32>
    %c0_24 = arith.constant 0 : index
    %c0_25 = arith.constant 0 : index
    %32 = vector.load %arg2[%c0_24, %c0_25] : memref<16x128xf32, #tpu.memory_space<vmem>>, vector<16x128xf32>
    %33 = vector.shape_cast %32 : vector<16x128xf32> to vector<1x16x128xf32>
    %34 = vector.broadcast %33 : vector<1x16x128xf32> to vector<16x16x128xf32>
    %35 = arith.mulf %31, %34 : vector<16x16x128xf32>
    %cst_26 = arith.constant dense<0xFF800000> : vector<16x128xf32>
    %36 = vector.multi_reduction <maximumf>, %35, %cst_26 [1] : vector<16x16x128xf32> to vector<16x128xf32>
    %c0_27 = arith.constant 0 : index
    %c0_28 = arith.constant 0 : index
    %37 = vector.load %arg5[%c0_27, %c0_28] : memref<128x128xf32, #tpu.memory_space<vmem>>, vector<128x128xf32>
    %cst_29 = arith.constant dense<0.000000e+00> : vector<16x128xf32>
    %38 = tpu.matmul %36, %37, %cst_29 {dimension_numbers = #tpu.dot_dimension_numbers<[1], [0], [0], [1], [0, 0, 1, 1], [], []>} : vector<16x128xf32>, vector<128x128xf32>, vector<16x128xf32> -> vector<16x128xf32>
    %c0_30 = arith.constant 0 : index
    %c0_31 = arith.constant 0 : index
    %39 = vector.load %arg6[%c0_30, %c0_31] : memref<1x128xf32, #tpu.memory_space<vmem>>, vector<1x128xf32>
    %40 = vector.broadcast %39 : vector<1x128xf32> to vector<16x128xf32>
    %41 = arith.addf %38, %40 : vector<16x128xf32>
    %c0_32 = arith.constant 0 : index
    %c0_33 = arith.constant 0 : index
    %42 = vector.load %arg7[%c0_32, %c0_33] : memref<16x128xf32, #tpu.memory_space<vmem>>, vector<16x128xf32>
    tpu.vector_store %arg7[%c0_32, %c0_33], %41 {strides = array<i32>} : memref<16x128xf32, #tpu.memory_space<vmem>>, vector<16x128xf32>,
    return
  }
  func.func @transform_0(%arg0: i32) -> (i32, i32, i32) {
    %c0_i32 = arith.constant 0 : i32
    %c0_i32_0 = arith.constant 0 : i32
    %c0_i32_1 = arith.constant 0 : i32
    return %arg0, %c0_i32, %c0_i32_0 : i32, i32, i32
  }
  func.func @transform_1(%arg0: i32) -> (i32, i32) {
    %c0_i32 = arith.constant 0 : i32
    %c0_i32_0 = arith.constant 0 : i32
    %c0_i32_1 = arith.constant 0 : i32
    return %c0_i32, %c0_i32_0 : i32, i32
  }
  func.func @transform_2(%arg0: i32) -> (i32, i32) {
    %c0_i32 = arith.constant 0 : i32
    %c0_i32_0 = arith.constant 0 : i32
    %c0_i32_1 = arith.constant 0 : i32
    return %c0_i32, %c0_i32_0 : i32, i32
  }
  func.func @transform_3(%arg0: i32) -> (i32, i32) {
    %c0_i32 = arith.constant 0 : i32
    %c0_i32_0 = arith.constant 0 : i32
    %c0_i32_1 = arith.constant 0 : i32
    return %c0_i32, %c0_i32_0 : i32, i32
  }
  func.func @transform_4(%arg0: i32) -> (i32, i32) {
    %c0_i32 = arith.constant 0 : i32
    %c0_i32_0 = arith.constant 0 : i32
    %c0_i32_1 = arith.constant 0 : i32
    return %c0_i32, %c0_i32_0 : i32, i32
  }
  func.func @transform_5(%arg0: i32) -> (i32, i32) {
    %c0_i32 = arith.constant 0 : i32
    %c0_i32_0 = arith.constant 0 : i32
    %c0_i32_1 = arith.constant 0 : i32
    return %c0_i32, %c0_i32_0 : i32, i32
  }
  func.func @transform_6(%arg0: i32) -> (i32, i32) {
    %c0_i32 = arith.constant 0 : i32
    %c0_i32_0 = arith.constant 0 : i32
    return %arg0, %c0_i32 : i32, i32
  }
}

</mosaic_0001>

<llo_original>
// kernel: tpu_custom_call.1
$region0: #{tpu_custom_call.1}
  #allocation0 [shape = 'u32[]', space=smem, size = 0x4, offset = 0x4, fixed_abs, tag = 'smem constant byte address 0x4 - core index']
  #allocation1 [shape = 'u32[72,128]{1,0:T(1,128)}', space=vmem, size = 0x9000, scoped, tag = 'internal scratch']
  %s0 = inlined_call_operand.vmem [shape: bf16[16,20,32], index: 0, kind: input, shape index: {}]
  %s1 = inlined_call_operand.vmem [shape: f32[16,128], index: 1, kind: input, shape index: {}]
  %s2 = inlined_call_operand.vmem [shape: bf16[160,128], index: 2, kind: input, shape index: {}]
  %s3 = inlined_call_operand.vmem [shape: f32[1,128], index: 3, kind: input, shape index: {}]
  %s4 = inlined_call_operand.vmem [shape: f32[128,128], index: 4, kind: input, shape index: {}]
  %s5 = inlined_call_operand.vmem [shape: f32[1,128], index: 5, kind: input, shape index: {}]
  %s6 = inlined_call_operand.hbm [shape: f32[16,128], index: 6, kind: output, shape index: {}]
  %s7 = sld [smem:[#allocation0]]
  $region34: #{tpu_custom_call.1} parent=0
    _
  %s9 = ssub.s32 1, %s7
  %s10 = scalar_select 0, %s9, %s7
  $region1: #{tpu_custom_call.1} parent=0
    #allocation2 [shape = 'u8[8192]{0}', space=vmem, size = 0x2000, scoped, tag = 'output window, operand 0, single buffered']
    #allocation3 [shape = 's32[1]{0}', space=sflag, size = 0x4, scoped, tag = 'scoped memory for tpu_custom_call.1']
    %11 = vsyncpa [#allocation3], 0
    // Predicated region
    $region2: #{tpu_custom_call.1} parent=1 // pred_check
      _
    $region3: #{tpu_custom_call.1} parent=1 // pred_check_branch
      %13 = sbr.rel (0) target = $region5
    $region4: #{tpu_custom_call.1} parent=1 // pred_region
      _
    $region5: #{tpu_custom_call.1} parent=1 // pred_fallthru
      _
    // Predicated region
    $region6: #{tpu_custom_call.1} parent=1 // pred_check
      _
    $region7: #{tpu_custom_call.1} parent=1 // pred_check_branch
      %15 = sbr.rel (0) target = $region9
    $region8: #{tpu_custom_call.1} parent=1 // pred_region
      _
    $region9: #{tpu_custom_call.1} parent=1 // pred_fallthru
      _
    // Predicated region
    $region10: #{tpu_custom_call.1} parent=1 // pred_check
      _
    $region11: #{tpu_custom_call.1} parent=1 // pred_check_branch
      %17 = sbr.rel (0) target = $region13
    $region12: #{tpu_custom_call.1} parent=1 // pred_region
      _
    $region13: #{tpu_custom_call.1} parent=1 // pred_fallthru
      _
    // Predicated region
    $region14: #{tpu_custom_call.1} parent=1 // pred_check
      _
    $region15: #{tpu_custom_call.1} parent=1 // pred_check_branch
      %19 = sbr.rel (0) target = $region17
    $region16: #{tpu_custom_call.1} parent=1 // pred_region
      _
    $region17: #{tpu_custom_call.1} parent=1 // pred_fallthru
      _
    // Predicated region
    $region18: #{tpu_custom_call.1} parent=1 // pred_check
      _
    $region19: #{tpu_custom_call.1} parent=1 // pred_check_branch
      %21 = sbr.rel (0) target = $region21
    $region20: #{tpu_custom_call.1} parent=1 // pred_region
      _
    $region21: #{tpu_custom_call.1} parent=1 // pred_fallthru
      _
    // Predicated region
    $region22: #{tpu_custom_call.1} parent=1 // pred_check
      _
    $region23: #{tpu_custom_call.1} parent=1 // pred_check_branch
      %23 = sbr.rel (0) target = $region25
    $region24: #{tpu_custom_call.1} parent=1 // pred_region
      _
    $region25: #{tpu_custom_call.1} parent=1 // pred_fallthru
      _
    %v25 = vld [vmem:[%s0] sm:$0xf]
    %v26 = vld [vmem:[%s0 + $0x4] sm:$0xf]
    %v27 = vld [vmem:[%s0 + $0xc] sm:$0xf]
    %v28 = vld [vmem:[%s0 + $0x10] sm:$0xf]
    %v29 = vld [vmem:[%s0 + $0x18] sm:$0xf]
    %v30 = vld [vmem:[%s0 + $0x1c] sm:$0xf]
    %v31 = vld [vmem:[%s0 + $0x24] sm:$0xf]
    %v32 = vld [vmem:[%s0 + $0x28] sm:$0xf]
    %v33 = vld [vmem:[%s0 + $0x30] sm:$0xf]
    %v34 = vld [vmem:[%s0 + $0x34] sm:$0xf]
    %v35 = vld [vmem:[%s0 + $0x3c] sm:$0xf]
    %v36 = vld [vmem:[%s0 + $0x40] sm:$0xf]
    %v37 = vld [vmem:[%s0 + $0x48] sm:$0xf]
    %v38 = vld [vmem:[%s0 + $0x4c] sm:$0xf]
    %v39 = vld [vmem:[%s0 + $0x54] sm:$0xf]
    %v40 = vld [vmem:[%s0 + $0x58] sm:$0xf]
    %v41 = vld [vmem:[%s0 + $0x60] sm:$0xf]
    %v42 = vld [vmem:[%s0 + $0x64] sm:$0xf]
    %v43 = vld [vmem:[%s0 + $0x6c] sm:$0xf]
    %v44 = vld [vmem:[%s0 + $0x70] sm:$0xf]
    %v45 = vld [vmem:[%s0 + $0x78] sm:$0xf]
    %v46 = vld [vmem:[%s0 + $0x7c] sm:$0xf]
    %v47 = vld [vmem:[%s0 + $0x84] sm:$0xf]
    %v48 = vld [vmem:[%s0 + $0x88] sm:$0xf]
    %v49 = vld [vmem:[%s0 + $0x90] sm:$0xf]
    %v50 = vld [vmem:[%s0 + $0x94] sm:$0xf]
    %v51 = vld [vmem:[%s0 + $0x9c] sm:$0xf]
    %v52 = vld [vmem:[%s0 + $0xa0] sm:$0xf]
    %v53 = vld [vmem:[%s0 + $0xa8] sm:$0xf]
    %v54 = vld [vmem:[%s0 + $0xac] sm:$0xf]
    %v55 = vld [vmem:[%s0 + $0xb4] sm:$0xf]
    %v56 = vld [vmem:[%s0 + $0xb8] sm:$0xf]
    %v57 = vld [vmem:[%s2] sm:$0xf]
    %v58 = vld [vmem:[%s2 + $0x4] sm:$0xf]
    %v59 = vld [vmem:[%s2 + $0x8] sm:$0xf]
    %v60 = vld [vmem:[%s2 + $0xc] sm:$0xf]
    %v61 = vld [vmem:[%s0 + $0x8] sm:$0x1]
    %v62 = vld [vmem:[%s0 + $0x14] sm:$0x1]
    %v63 = vld [vmem:[%s0 + $0x20] sm:$0x1]
    %v64 = vld [vmem:[%s0 + $0x2c] sm:$0x1]
    %v65 = vld [vmem:[%s0 + $0x38] sm:$0x1]
    %v66 = vld [vmem:[%s0 + $0x44] sm:$0x1]
    %v67 = vld [vmem:[%s0 + $0x50] sm:$0x1]
    %v68 = vld [vmem:[%s0 + $0x5c] sm:$0x1]
    %v69 = vld [vmem:[%s0 + $0x68] sm:$0x1]
    %v70 = vld [vmem:[%s0 + $0x74] sm:$0x1]
    %v71 = vld [vmem:[%s0 + $0x80] sm:$0x1]
    %v72 = vld [vmem:[%s0 + $0x8c] sm:$0x1]
    %v73 = vld [vmem:[%s0 + $0x98] sm:$0x1]
    %v74 = vld [vmem:[%s0 + $0xa4] sm:$0x1]
    %v75 = vld [vmem:[%s0 + $0xb0] sm:$0x1]
    %v76 = vld [vmem:[%s0 + $0xbc] sm:$0x1]
    %vm77 = vsmask.f32 3328
    %vm78 = vsmask.f32 7440
    %vm79 = vmor %vm77, %vm78
    %v81 = vshrl.u32 %v25, 16
    %v83 = vrot.slane %v81, 4
    %v84 = vshll.u32 %v25, 16
    %v86 = vrot.slane %v84, 5
    %v87 = vor.u32 %v83, %v86
    %v88 = vrot.slane %v87, 4
    %v90 = vshll.u32 %v26, 16
    %v92 = vrot.slane %v90, 5
    %v93 = vsel %vm79, %v88, %v92
    %v94 = vshrl.u32 %v26, 16
    %v96 = vrot.slane %v94, 4
    %v97 = vor.u32 %v96, %v92
    %v98 = vrot.slane %v97, 4
    %v100 = vshll.u32 %v61, 16
    %v102 = vrot.slane %v100, 5
    %v103 = vsel %vm79, %v98, %v102
    %v105 = vshrl.u32 %v27, 16
    %v107 = vrot.slane %v105, 4
    %v108 = vshll.u32 %v27, 16
    %v110 = vrot.slane %v108, 5
    %v111 = vor.u32 %v107, %v110
    %v112 = vrot.slane %v111, 4
    %v114 = vshll.u32 %v28, 16
    %v116 = vrot.slane %v114, 5
    %v117 = vsel %vm79, %v112, %v116
    %v118 = vshrl.u32 %v28, 16
    %v120 = vrot.slane %v118, 4
    %v121 = vor.u32 %v120, %v116
    %v122 = vrot.slane %v121, 4
    %v124 = vshll.u32 %v62, 16
    %v126 = vrot.slane %v124, 5
    %v127 = vsel %vm79, %v122, %v126
    %v129 = vshrl.u32 %v29, 16
    %v131 = vrot.slane %v129, 4
    %v132 = vshll.u32 %v29, 16
    %v134 = vrot.slane %v132, 5
    %v135 = vor.u32 %v131, %v134
    %v136 = vrot.slane %v135, 4
    %v138 = vshll.u32 %v30, 16
    %v140 = vrot.slane %v138, 5
    %v141 = vsel %vm79, %v136, %v140
    %v142 = vshrl.u32 %v30, 16
    %v144 = vrot.slane %v142, 4
    %v145 = vor.u32 %v144, %v140
    %v146 = vrot.slane %v145, 4
    %v148 = vshll.u32 %v63, 16
    %v150 = vrot.slane %v148, 5
    %v151 = vsel %vm79, %v146, %v150
    %v153 = vshrl.u32 %v31, 16
    %v155 = vrot.slane %v153, 4
    %v156 = vshll.u32 %v31, 16
    %v158 = vrot.slane %v156, 5
    %v159 = vor.u32 %v155, %v158
    %v160 = vrot.slane %v159, 4
    %v162 = vshll.u32 %v32, 16
    %v164 = vrot.slane %v162, 5
    %v165 = vsel %vm79, %v160, %v164
    %v166 = vshrl.u32 %v32, 16
    %v168 = vrot.slane %v166, 4
    %v169 = vor.u32 %v168, %v164
    %v170 = vrot.slane %v169, 4
    %v172 = vshll.u32 %v64, 16
    %v174 = vrot.slane %v172, 5
    %v175 = vsel %vm79, %v170, %v174
    %v177 = vshrl.u32 %v33, 16
    %v179 = vrot.slane %v177, 4
    %v180 = vshll.u32 %v33, 16
    %v182 = vrot.slane %v180, 5
    %v183 = vor.u32 %v179, %v182
    %v184 = vrot.slane %v183, 4
    %v186 = vshll.u32 %v34, 16
    %v188 = vrot.slane %v186, 5
    %v189 = vsel %vm79, %v184, %v188
    %v190 = vshrl.u32 %v34, 16
    %v192 = vrot.slane %v190, 4
    %v193 = vor.u32 %v192, %v188
    %v194 = vrot.slane %v193, 4
    %v196 = vshll.u32 %v65, 16
    %v198 = vrot.slane %v196, 5
    %v199 = vsel %vm79, %v194, %v198
    %v201 = vshrl.u32 %v35, 16
    %v203 = vrot.slane %v201, 4
    %v204 = vshll.u32 %v35, 16
    %v206 = vrot.slane %v204, 5
    %v207 = vor.u32 %v203, %v206
    %v208 = vrot.slane %v207, 4
    %v210 = vshll.u32 %v36, 16
    %v212 = vrot.slane %v210, 5
    %v213 = vsel %vm79, %v208, %v212
    %v214 = vshrl.u32 %v36, 16
    %v216 = vrot.slane %v214, 4
    %v217 = vor.u32 %v216, %v212
    %v218 = vrot.slane %v217, 4
    %v220 = vshll.u32 %v66, 16
    %v222 = vrot.slane %v220, 5
    %v223 = vsel %vm79, %v218, %v222
    %v225 = vshrl.u32 %v37, 16
    %v227 = vrot.slane %v225, 4
    %v228 = vshll.u32 %v37, 16
    %v230 = vrot.slane %v228, 5
    %v231 = vor.u32 %v227, %v230
    %v232 = vrot.slane %v231, 4
    %v234 = vshll.u32 %v38, 16
    %v236 = vrot.slane %v234, 5
    %v237 = vsel %vm79, %v232, %v236
    %v238 = vshrl.u32 %v38, 16
    %v240 = vrot.slane %v238, 4
    %v241 = vor.u32 %v240, %v236
    %v242 = vrot.slane %v241, 4
    %v244 = vshll.u32 %v67, 16
    %v246 = vrot.slane %v244, 5
    %v247 = vsel %vm79, %v242, %v246
    %v249 = vshrl.u32 %v39, 16
    %v251 = vrot.slane %v249, 4
    %v252 = vshll.u32 %v39, 16
    %v254 = vrot.slane %v252, 5
    %v255 = vor.u32 %v251, %v254
    %v256 = vrot.slane %v255, 4
    %v258 = vshll.u32 %v40, 16
    %v260 = vrot.slane %v258, 5
    %v261 = vsel %vm79, %v256, %v260
    %v262 = vshrl.u32 %v40, 16
    %v264 = vrot.slane %v262, 4
    %v265 = vor.u32 %v264, %v260
    %v266 = vrot.slane %v265, 4
    %v268 = vshll.u32 %v68, 16
    %v270 = vrot.slane %v268, 5
    %v271 = vsel %vm79, %v266, %v270
    %v273 = vshrl.u32 %v41, 16
    %v275 = vrot.slane %v273, 4
    %v276 = vshll.u32 %v41, 16
    %v278 = vrot.slane %v276, 5
    %v279 = vor.u32 %v275, %v278
    %v280 = vrot.slane %v279, 4
    %v282 = vshll.u32 %v42, 16
    %v284 = vrot.slane %v282, 5
    %v285 = vsel %vm79, %v280, %v284
    %v286 = vshrl.u32 %v42, 16
    %v288 = vrot.slane %v286, 4
    %v289 = vor.u32 %v288, %v284
    %v290 = vrot.slane %v289, 4
    %v292 = vshll.u32 %v69, 16
    %v294 = vrot.slane %v292, 5
    %v295 = vsel %vm79, %v290, %v294
    %v297 = vshrl.u32 %v43, 16
    %v299 = vrot.slane %v297, 4
    %v300 = vshll.u32 %v43, 16
    %v302 = vrot.slane %v300, 5
    %v303 = vor.u32 %v299, %v302
    %v304 = vrot.slane %v303, 4
    %v306 = vshll.u32 %v44, 16
    %v308 = vrot.slane %v306, 5
    %v309 = vsel %vm79, %v304, %v308
    %v310 = vshrl.u32 %v44, 16
    %v312 = vrot.slane %v310, 4
    %v313 = vor.u32 %v312, %v308
    %v314 = vrot.slane %v313, 4
    %v316 = vshll.u32 %v70, 16
    %v318 = vrot.slane %v316, 5
    %v319 = vsel %vm79, %v314, %v318
    %v321 = vshrl.u32 %v45, 16
    %v323 = vrot.slane %v321, 4
    %v324 = vshll.u32 %v45, 16
    %v326 = vrot.slane %v324, 5
    %v327 = vor.u32 %v323, %v326
    %v328 = vrot.slane %v327, 4
    %v330 = vshll.u32 %v46, 16
    %v332 = vrot.slane %v330, 5
    %v333 = vsel %vm79, %v328, %v332
    %v334 = vshrl.u32 %v46, 16
    %v336 = vrot.slane %v334, 4
    %v337 = vor.u32 %v336, %v332
    %v338 = vrot.slane %v337, 4
    %v340 = vshll.u32 %v71, 16
    %v342 = vrot.slane %v340, 5
    %v343 = vsel %vm79, %v338, %v342
    %v345 = vshrl.u32 %v47, 16
    %v347 = vrot.slane %v345, 4
    %v348 = vshll.u32 %v47, 16
    %v350 = vrot.slane %v348, 5
    %v351 = vor.u32 %v347, %v350
    %v352 = vrot.slane %v351, 4
    %v354 = vshll.u32 %v48, 16
    %v356 = vrot.slane %v354, 5
    %v357 = vsel %vm79, %v352, %v356
    %v358 = vshrl.u32 %v48, 16
    %v360 = vrot.slane %v358, 4
    %v361 = vor.u32 %v360, %v356
    %v362 = vrot.slane %v361, 4
    %v364 = vshll.u32 %v72, 16
    %v366 = vrot.slane %v364, 5
    %v367 = vsel %vm79, %v362, %v366
    %v369 = vshrl.u32 %v49, 16
    %v371 = vrot.slane %v369, 4
    %v372 = vshll.u32 %v49, 16
    %v374 = vrot.slane %v372, 5
    %v375 = vor.u32 %v371, %v374
    %v376 = vrot.slane %v375, 4
    %v378 = vshll.u32 %v50, 16
    %v380 = vrot.slane %v378, 5
    %v381 = vsel %vm79, %v376, %v380
    %v382 = vshrl.u32 %v50, 16
    %v384 = vrot.slane %v382, 4
    %v385 = vor.u32 %v384, %v380
    %v386 = vrot.slane %v385, 4
    %v388 = vshll.u32 %v73, 16
    %v390 = vrot.slane %v388, 5
    %v391 = vsel %vm79, %v386, %v390
    %v393 = vshrl.u32 %v51, 16
    %v395 = vrot.slane %v393, 4
    %v396 = vshll.u32 %v51, 16
    %v398 = vrot.slane %v396, 5
    %v399 = vor.u32 %v395, %v398
    %v400 = vrot.slane %v399, 4
    %v402 = vshll.u32 %v52, 16
    %v404 = vrot.slane %v402, 5
    %v405 = vsel %vm79, %v400, %v404
    %v406 = vshrl.u32 %v52, 16
    %v408 = vrot.slane %v406, 4
    %v409 = vor.u32 %v408, %v404
    %v410 = vrot.slane %v409, 4
    %v412 = vshll.u32 %v74, 16
    %v414 = vrot.slane %v412, 5
    %v415 = vsel %vm79, %v410, %v414
    %v417 = vshrl.u32 %v53, 16
    %v419 = vrot.slane %v417, 4
    %v420 = vshll.u32 %v53, 16
    %v422 = vrot.slane %v420, 5
    %v423 = vor.u32 %v419, %v422
    %v424 = vrot.slane %v423, 4
    %v426 = vshll.u32 %v54, 16
    %v428 = vrot.slane %v426, 5
    %v429 = vsel %vm79, %v424, %v428
    %v430 = vshrl.u32 %v54, 16
    %v432 = vrot.slane %v430, 4
    %v433 = vor.u32 %v432, %v428
    %v434 = vrot.slane %v433, 4
    %v436 = vshll.u32 %v75, 16
    %v438 = vrot.slane %v436, 5
    %v439 = vsel %vm79, %v434, %v438
    %v441 = vshrl.u32 %v55, 16
    %v443 = vrot.slane %v441, 4
    %v444 = vshll.u32 %v55, 16
    %v446 = vrot.slane %v444, 5
    %v447 = vor.u32 %v443, %v446
    %v448 = vrot.slane %v447, 4
    %v450 = vshll.u32 %v56, 16
    %v452 = vrot.slane %v450, 5
    %v453 = vsel %vm79, %v448, %v452
    %v454 = vshrl.u32 %v56, 16
    %v456 = vrot.slane %v454, 4
    %v457 = vor.u32 %v456, %v452
    %v458 = vrot.slane %v457, 4
    %v460 = vshll.u32 %v76, 16
    %v462 = vrot.slane %v460, 5
    %v463 = vsel %vm79, %v458, %v462
    %v464 = vld [vmem:[%s2 + $0x10] sm:$0xf]
    %v465 = vld [vmem:[%s2 + $0x14] sm:$0xf]
    %v466 = vld [vmem:[%s2 + $0x18] sm:$0xf]
    %v467 = vld [vmem:[%s2 + $0x1c] sm:$0xf]
    %v468 = vunpack.c.l.b16 %v93
    %v469 = vunpack.c.l.b16 %v103
    %v470 = vunpack.c.l.b16 %v117
    %v471 = vunpack.c.l.b16 %v127
    %v472 = vunpack.c.l.b16 %v141
    %v473 = vunpack.c.l.b16 %v151
    %v474 = vunpack.c.l.b16 %v165
    %v475 = vunpack.c.l.b16 %v175
    %v476 = vunpack.c.l.b16 %v189
    %v477 = vunpack.c.l.b16 %v199
    %v478 = vunpack.c.l.b16 %v213
    %v479 = vunpack.c.l.b16 %v223
    %v480 = vunpack.c.l.b16 %v237
    %v481 = vunpack.c.l.b16 %v247
    %v482 = vunpack.c.l.b16 %v261
    %v483 = vunpack.c.l.b16 %v271
    %v484 = vunpack.c.l.b16 %v285
    %v485 = vunpack.c.l.b16 %v295
    %v486 = vunpack.c.l.b16 %v309
    %v487 = vunpack.c.l.b16 %v319
    %v488 = vunpack.c.l.b16 %v333
    %v489 = vunpack.c.l.b16 %v343
    %v490 = vunpack.c.l.b16 %v357
    %v491 = vunpack.c.l.b16 %v367
    %v492 = vunpack.c.l.b16 %v381
    %v493 = vunpack.c.l.b16 %v391
    %v494 = vunpack.c.l.b16 %v405
    %v495 = vunpack.c.l.b16 %v415
    %v496 = vunpack.c.l.b16 %v429
    %v497 = vunpack.c.l.b16 %v439
    %v498 = vunpack.c.l.b16 %v453
    %v499 = vunpack.c.l.b16 %v463
    %v500 = vpack.c.b16 %v469, %v468
    %v501 = vpack.c.b16 %v471, %v470
    %v502 = vpack.c.b16 %v473, %v472
    %v503 = vpack.c.b16 %v475, %v474
    %v504 = vpack.c.b16 %v477, %v476
    %v505 = vpack.c.b16 %v479, %v478
    %v506 = vpack.c.b16 %v481, %v480
    %v507 = vpack.c.b16 %v483, %v482
    %v508 = vpack.c.b16 %v485, %v484
    %v509 = vpack.c.b16 %v487, %v486
    %v510 = vpack.c.b16 %v489, %v488
    %v511 = vpack.c.b16 %v491, %v490
    %v512 = vpack.c.b16 %v493, %v492
    %v513 = vpack.c.b16 %v495, %v494
    %v514 = vpack.c.b16 %v497, %v496
    %v515 = vpack.c.b16 %v499, %v498
    %v520 = vunpack.c.l.b16 %v464
    %v521 = vunpack.c.l.b16 %v465
    %v522 = vunpack.c.l.b16 %v466
    %v523 = vunpack.c.l.b16 %v467
    %v524 = vpack.c.b16 %v521, %v520
    %v525 = vpack.c.b16 %v523, %v522
    %vm528 = vcmask 261120
    %v530 = vsel %vm528, %v500, 0
    %v533 = vsel %vm528, %v501, 0
    %v536 = vsel %vm528, %v502, 0
    %v539 = vsel %vm528, %v503, 0
    %v542 = vsel %vm528, %v504, 0
    %v545 = vsel %vm528, %v505, 0
    %v548 = vsel %vm528, %v506, 0
    %v551 = vsel %vm528, %v507, 0
    %v554 = vsel %vm528, %v508, 0
    %v557 = vsel %vm528, %v509, 0
    %v560 = vsel %vm528, %v510, 0
    %v563 = vsel %vm528, %v511, 0
    %v566 = vsel %vm528, %v512, 0
    %v569 = vsel %vm528, %v513, 0
    %v572 = vsel %vm528, %v514, 0
    %v575 = vsel %vm528, %v515, 0
    %577 = vmatpush.bf16.msra.mxu0 0
    %578 = vmatpush.bf16.msra.mxu0 0
    %579 = vmatpush.bf16.msra.mxu0 0
    %580 = vmatpush.bf16.msra.mxu0 0
    %581 = vmatpush.bf16.msra.mxu0 0
    %582 = vmatpush.bf16.msra.mxu0 0
    %583 = vmatpush.bf16.msra.mxu0 %v525
    %584 = vmatpush.bf16.msra.mxu0 %v524
    %585 = vmatmul.bf16.gmra.mxu0 %v530
    %v586 = vpop.f32.mrf.mxu0
    %v587 = vadd.f32 0.0, %v586
    %v588 = vpop.f32.mrf.mxu0
    %v589 = vadd.f32 0.0, %v588
    %590 = vmatmul.bf16.gmra.mxu0 %v533
    %v591 = vpop.f32.mrf.mxu0
    %v592 = vadd.f32 0.0, %v591
    %v593 = vpop.f32.mrf.mxu0
    %v594 = vadd.f32 0.0, %v593
    %595 = vmatmul.bf16.gmra.mxu0 %v536
    %v596 = vpop.f32.mrf.mxu0
    %v597 = vadd.f32 0.0, %v596
    %v598 = vpop.f32.mrf.mxu0
    %v599 = vadd.f32 0.0, %v598
    %600 = vmatmul.bf16.gmra.mxu0 %v539
    %v601 = vpop.f32.mrf.mxu0
    %v602 = vadd.f32 0.0, %v601
    %v603 = vpop.f32.mrf.mxu0
    %v604 = vadd.f32 0.0, %v603
    %605 = vmatmul.bf16.gmra.mxu0 %v542
    %v606 = vpop.f32.mrf.mxu0
    %v607 = vadd.f32 0.0, %v606
    %v608 = vpop.f32.mrf.mxu0
    %v609 = vadd.f32 0.0, %v608
    %610 = vmatmul.bf16.gmra.mxu0 %v545
    %v611 = vpop.f32.mrf.mxu0
    %v612 = vadd.f32 0.0, %v611
    %v613 = vpop.f32.mrf.mxu0
    %v614 = vadd.f32 0.0, %v613
    %615 = vmatmul.bf16.gmra.mxu0 %v548
    %v616 = vpop.f32.mrf.mxu0
    %v617 = vadd.f32 0.0, %v616
    %v618 = vpop.f32.mrf.mxu0
    %v619 = vadd.f32 0.0, %v618
    %620 = vmatmul.bf16.gmra.mxu0 %v551
    %v621 = vpop.f32.mrf.mxu0
    %v622 = vadd.f32 0.0, %v621
    %v623 = vpop.f32.mrf.mxu0
    %v624 = vadd.f32 0.0, %v623
    %625 = vmatmul.bf16.gmra.mxu0 %v554
    %v626 = vpop.f32.mrf.mxu0
    %v627 = vadd.f32 0.0, %v626
    %v628 = vpop.f32.mrf.mxu0
    %v629 = vadd.f32 0.0, %v628
    %630 = vmatmul.bf16.gmra.mxu0 %v557
    %v631 = vpop.f32.mrf.mxu0
    %v632 = vadd.f32 0.0, %v631
    %v633 = vpop.f32.mrf.mxu0
    %v634 = vadd.f32 0.0, %v633
    %635 = vmatmul.bf16.gmra.mxu0 %v560
    %v636 = vpop.f32.mrf.mxu0
    %v637 = vadd.f32 0.0, %v636
    %v638 = vpop.f32.mrf.mxu0
    %v639 = vadd.f32 0.0, %v638
    %640 = vmatmul.bf16.gmra.mxu0 %v563
    %v641 = vpop.f32.mrf.mxu0
    %v642 = vadd.f32 0.0, %v641
    %v643 = vpop.f32.mrf.mxu0
    %v644 = vadd.f32 0.0, %v643
    %645 = vmatmul.bf16.gmra.mxu0 %v566
    %v646 = vpop.f32.mrf.mxu0
    %v647 = vadd.f32 0.0, %v646
    %v648 = vpop.f32.mrf.mxu0
    %v649 = vadd.f32 0.0, %v648
    %650 = vmatmul.bf16.gmra.mxu0 %v569
    %v651 = vpop.f32.mrf.mxu0
    %v652 = vadd.f32 0.0, %v651
    %v653 = vpop.f32.mrf.mxu0
    %v654 = vadd.f32 0.0, %v653
    %655 = vmatmul.bf16.gmra.mxu0 %v572
    %v656 = vpop.f32.mrf.mxu0
    %v657 = vadd.f32 0.0, %v656
    %v658 = vpop.f32.mrf.mxu0
    %v659 = vadd.f32 0.0, %v658
    %660 = vmatmul.bf16.gmra.mxu0 %v575
    %v661 = vpop.f32.mrf.mxu0
    %v662 = vadd.f32 0.0, %v661
    %v663 = vpop.f32.mrf.mxu0
    %v664 = vadd.f32 0.0, %v663
    %665 = vdwg.mxu0
    %v698 = vunpack.c.l.b16 %v25
    %v699 = vunpack.c.l.b16 %v26
    %v700 = vunpack.c.l.b16 %v27
    %v701 = vunpack.c.l.b16 %v28
    %v702 = vunpack.c.l.b16 %v29
    %v703 = vunpack.c.l.b16 %v30
    %v704 = vunpack.c.l.b16 %v31
    %v705 = vunpack.c.l.b16 %v32
    %v706 = vunpack.c.l.b16 %v33
    %v707 = vunpack.c.l.b16 %v34
    %v708 = vunpack.c.l.b16 %v35
    %v709 = vunpack.c.l.b16 %v36
    %v710 = vunpack.c.l.b16 %v37
    %v711 = vunpack.c.l.b16 %v38
    %v712 = vunpack.c.l.b16 %v39
    %v713 = vunpack.c.l.b16 %v40
    %v714 = vunpack.c.l.b16 %v41
    %v715 = vunpack.c.l.b16 %v42
    %v716 = vunpack.c.l.b16 %v43
    %v717 = vunpack.c.l.b16 %v44
    %v718 = vunpack.c.l.b16 %v45
    %v719 = vunpack.c.l.b16 %v46
    %v720 = vunpack.c.l.b16 %v47
    %v721 = vunpack.c.l.b16 %v48
    %v722 = vunpack.c.l.b16 %v49
    %v723 = vunpack.c.l.b16 %v50
    %v724 = vunpack.c.l.b16 %v51
    %v725 = vunpack.c.l.b16 %v52
    %v726 = vunpack.c.l.b16 %v53
    %v727 = vunpack.c.l.b16 %v54
    %v728 = vunpack.c.l.b16 %v55
    %v729 = vunpack.c.l.b16 %v56
    %v730 = vpack.c.b16 %v699, %v698
    %v731 = vpack.c.b16 %v701, %v700
    %v732 = vpack.c.b16 %v703, %v702
    %v733 = vpack.c.b16 %v705, %v704
    %v734 = vpack.c.b16 %v707, %v706
    %v735 = vpack.c.b16 %v709, %v708
    %v736 = vpack.c.b16 %v711, %v710
    %v737 = vpack.c.b16 %v713, %v712
    %v738 = vpack.c.b16 %v715, %v714
    %v739 = vpack.c.b16 %v717, %v716
    %v740 = vpack.c.b16 %v719, %v718
    %v741 = vpack.c.b16 %v721, %v720
    %v742 = vpack.c.b16 %v723, %v722
    %v743 = vpack.c.b16 %v725, %v724
    %v744 = vpack.c.b16 %v727, %v726
    %v745 = vpack.c.b16 %v729, %v728
    %v750 = vunpack.c.l.b16 %v57
    %v751 = vunpack.c.l.b16 %v58
    %v752 = vunpack.c.l.b16 %v59
    %v753 = vunpack.c.l.b16 %v60
    %v754 = vpack.c.b16 %v751, %v750
    %v755 = vpack.c.b16 %v753, %v752
    %v759 = vsel %vm528, %v730, 0
    %v762 = vsel %vm528, %v731, 0
    %v765 = vsel %vm528, %v732, 0
    %v768 = vsel %vm528, %v733, 0
    %v771 = vsel %vm528, %v734, 0
    %v774 = vsel %vm528, %v735, 0
    %v777 = vsel %vm528, %v736, 0
    %v780 = vsel %vm528, %v737, 0
    %v783 = vsel %vm528, %v738, 0
    %v786 = vsel %vm528, %v739, 0
    %v789 = vsel %vm528, %v740, 0
    %v792 = vsel %vm528, %v741, 0
    %v795 = vsel %vm528, %v742, 0
    %v798 = vsel %vm528, %v743, 0
    %v801 = vsel %vm528, %v744, 0
    %v804 = vsel %vm528, %v745, 0
    %806 = vmatpush.bf16.msra.mxu0 0
    %807 = vmatpush.bf16.msra.mxu0 0
    %808 = vmatpush.bf16.msra.mxu0 0
    %809 = vmatpush.bf16.msra.mxu0 0
    %810 = vmatpush.bf16.msra.mxu0 0
    %811 = vmatpush.bf16.msra.mxu0 0
    %812 = vmatpush.bf16.msra.mxu0 %v755
    %813 = vmatpush.bf16.msra.mxu0 %v754
    %814 = vmatmul.bf16.gmra.mxu0 %v759
    %v815 = vpop.f32.mrf.mxu0
    %v816 = vadd.f32 %v587, %v815
    %v817 = vpop.f32.mrf.mxu0
    %v818 = vadd.f32 %v589, %v817
    %819 = vmatmul.bf16.gmra.mxu0 %v762
    %v820 = vpop.f32.mrf.mxu0
    %v821 = vadd.f32 %v592, %v820
    %v822 = vpop.f32.mrf.mxu0
    %v823 = vadd.f32 %v594, %v822
    %824 = vmatmul.bf16.gmra.mxu0 %v765
    %v825 = vpop.f32.mrf.mxu0
    %v826 = vadd.f32 %v597, %v825
    %v827 = vpop.f32.mrf.mxu0
    %v828 = vadd.f32 %v599, %v827
    %829 = vmatmul.bf16.gmra.mxu0 %v768
    %v830 = vpop.f32.mrf.mxu0
    %v831 = vadd.f32 %v602, %v830
    %v832 = vpop.f32.mrf.mxu0
    %v833 = vadd.f32 %v604, %v832
    %834 = vmatmul.bf16.gmra.mxu0 %v771
    %v835 = vpop.f32.mrf.mxu0
    %v836 = vadd.f32 %v607, %v835
    %v837 = vpop.f32.mrf.mxu0
    %v838 = vadd.f32 %v609, %v837
    %839 = vmatmul.bf16.gmra.mxu0 %v774
    %v840 = vpop.f32.mrf.mxu0
    %v841 = vadd.f32 %v612, %v840
    %v842 = vpop.f32.mrf.mxu0
    %v843 = vadd.f32 %v614, %v842
    %844 = vmatmul.bf16.gmra.mxu0 %v777
    %v845 = vpop.f32.mrf.mxu0
    %v846 = vadd.f32 %v617, %v845
    %v847 = vpop.f32.mrf.mxu0
    %v848 = vadd.f32 %v619, %v847
    %849 = vmatmul.bf16.gmra.mxu0 %v780
    %v850 = vpop.f32.mrf.mxu0
    %v851 = vadd.f32 %v622, %v850
    %v852 = vpop.f32.mrf.mxu0
    %v853 = vadd.f32 %v624, %v852
    %854 = vmatmul.bf16.gmra.mxu0 %v783
    %v855 = vpop.f32.mrf.mxu0
    %v856 = vadd.f32 %v627, %v855
    %v857 = vpop.f32.mrf.mxu0
    %v858 = vadd.f32 %v629, %v857
    %859 = vmatmul.bf16.gmra.mxu0 %v786
    %v860 = vpop.f32.mrf.mxu0
    %v861 = vadd.f32 %v632, %v860
    %v862 = vpop.f32.mrf.mxu0
    %v863 = vadd.f32 %v634, %v862
    %864 = vmatmul.bf16.gmra.mxu0 %v789
    %v865 = vpop.f32.mrf.mxu0
    %v866 = vadd.f32 %v637, %v865
    %v867 = vpop.f32.mrf.mxu0
    %v868 = vadd.f32 %v639, %v867
    %869 = vmatmul.bf16.gmra.mxu0 %v792
    %v870 = vpop.f32.mrf.mxu0
    %v871 = vadd.f32 %v642, %v870
    %v872 = vpop.f32.mrf.mxu0
    %v873 = vadd.f32 %v644, %v872
    %874 = vmatmul.bf16.gmra.mxu0 %v795
    %v875 = vpop.f32.mrf.mxu0
    %v876 = vadd.f32 %v647, %v875
    %v877 = vpop.f32.mrf.mxu0
    %v878 = vadd.f32 %v649, %v877
    %879 = vmatmul.bf16.gmra.mxu0 %v798
    %v880 = vpop.f32.mrf.mxu0
    %v881 = vadd.f32 %v652, %v880
    %v882 = vpop.f32.mrf.mxu0
    %v883 = vadd.f32 %v654, %v882
    %884 = vmatmul.bf16.gmra.mxu0 %v801
    %v885 = vpop.f32.mrf.mxu0
    %v886 = vadd.f32 %v657, %v885
    %v887 = vpop.f32.mrf.mxu0
    %v888 = vadd.f32 %v659, %v887
    %889 = vmatmul.bf16.gmra.mxu0 %v804
    %v890 = vpop.f32.mrf.mxu0
    %v891 = vadd.f32 %v662, %v890
    %v892 = vpop.f32.mrf.mxu0
    %v893 = vadd.f32 %v664, %v892
    %894 = vdwg.mxu0
    %v895 = vld [vmem:[%s0] sm:$0xe]
    %v896 = vld [vmem:[%s0 + $0xc] sm:$0xe]
    %v897 = vld [vmem:[%s0 + $0x18] sm:$0xe]
    %v898 = vld [vmem:[%s0 + $0x24] sm:$0xe]
    %v899 = vld [vmem:[%s0 + $0x30] sm:$0xe]
    %v900 = vld [vmem:[%s0 + $0x3c] sm:$0xe]
    %v901 = vld [vmem:[%s0 + $0x48] sm:$0xe]
    %v902 = vld [vmem:[%s0 + $0x54] sm:$0xe]
    %v903 = vld [vmem:[%s0 + $0x60] sm:$0xe]
    %v904 = vld [vmem:[%s0 + $0x6c] sm:$0xe]
    %v905 = vld [vmem:[%s0 + $0x78] sm:$0xe]
    %v906 = vld [vmem:[%s0 + $0x84] sm:$0xe]
    %v907 = vld [vmem:[%s0 + $0x90] sm:$0xe]
    %v908 = vld [vmem:[%s0 + $0x9c] sm:$0xe]
    %v909 = vld [vmem:[%s0 + $0xa8] sm:$0xe]
    %v910 = vld [vmem:[%s0 + $0xb4] sm:$0xe]
    %vm943 = vcmask 1042432
    %vm944 = vcmask 1046532
    %vm945 = vmor %vm943, %vm944
    %v946 = vrot.slane %v895, 5
    %v947 = vrot.slane %v946, 4
    %v948 = vrot.slane %v26, 5
    %v949 = vsel %vm945, %v947, %v948
    %v950 = vrot.slane %v948, 4
    %v951 = vrot.slane %v61, 5
    %v952 = vsel %vm945, %v950, %v951
    %v953 = vrot.slane %v896, 5
    %v954 = vrot.slane %v953, 4
    %v955 = vrot.slane %v28, 5
    %v956 = vsel %vm945, %v954, %v955
    %v957 = vrot.slane %v955, 4
    %v958 = vrot.slane %v62, 5
    %v959 = vsel %vm945, %v957, %v958
    %v960 = vrot.slane %v897, 5
    %v961 = vrot.slane %v960, 4
    %v962 = vrot.slane %v30, 5
    %v963 = vsel %vm945, %v961, %v962
    %v964 = vrot.slane %v962, 4
    %v965 = vrot.slane %v63, 5
    %v966 = vsel %vm945, %v964, %v965
    %v967 = vrot.slane %v898, 5
    %v968 = vrot.slane %v967, 4
    %v969 = vrot.slane %v32, 5
    %v970 = vsel %vm945, %v968, %v969
    %v971 = vrot.slane %v969, 4
    %v972 = vrot.slane %v64, 5
    %v973 = vsel %vm945, %v971, %v972
    %v974 = vrot.slane %v899, 5
    %v975 = vrot.slane %v974, 4
    %v976 = vrot.slane %v34, 5
    %v977 = vsel %vm945, %v975, %v976
    %v978 = vrot.slane %v976, 4
    %v979 = vrot.slane %v65, 5
    %v980 = vsel %vm945, %v978, %v979
    %v981 = vrot.slane %v900, 5
    %v982 = vrot.slane %v981, 4
    %v983 = vrot.slane %v36, 5
    %v984 = vsel %vm945, %v982, %v983
    %v985 = vrot.slane %v983, 4
    %v986 = vrot.slane %v66, 5
    %v987 = vsel %vm945, %v985, %v986
    %v988 = vrot.slane %v901, 5
    %v989 = vrot.slane %v988, 4
    %v990 = vrot.slane %v38, 5
    %v991 = vsel %vm945, %v989, %v990
    %v992 = vrot.slane %v990, 4
    %v993 = vrot.slane %v67, 5
    %v994 = vsel %vm945, %v992, %v993
    %v995 = vrot.slane %v902, 5
    %v996 = vrot.slane %v995, 4
    %v997 = vrot.slane %v40, 5
    %v998 = vsel %vm945, %v996, %v997
    %v999 = vrot.slane %v997, 4
    %v1000 = vrot.slane %v68, 5
    %v1001 = vsel %vm945, %v999, %v1000
    %v1002 = vrot.slane %v903, 5
    %v1003 = vrot.slane %v1002, 4
    %v1004 = vrot.slane %v42, 5
    %v1005 = vsel %vm945, %v1003, %v1004
    %v1006 = vrot.slane %v1004, 4
    %v1007 = vrot.slane %v69, 5
    %v1008 = vsel %vm945, %v1006, %v1007
    %v1009 = vrot.slane %v904, 5
    %v1010 = vrot.slane %v1009, 4
    %v1011 = vrot.slane %v44, 5
    %v1012 = vsel %vm945, %v1010, %v1011
    %v1013 = vrot.slane %v1011, 4
    %v1014 = vrot.slane %v70, 5
    %v1015 = vsel %vm945, %v1013, %v1014
    %v1016 = vrot.slane %v905, 5
    %v1017 = vrot.slane %v1016, 4
    %v1018 = vrot.slane %v46, 5
    %v1019 = vsel %vm945, %v1017, %v1018
    %v1020 = vrot.slane %v1018, 4
    %v1021 = vrot.slane %v71, 5
    %v1022 = vsel %vm945, %v1020, %v1021
    %v1023 = vrot.slane %v906, 5
    %v1024 = vrot.slane %v1023, 4
    %v1025 = vrot.slane %v48, 5
    %v1026 = vsel %vm945, %v1024, %v1025
    %v1027 = vrot.slane %v1025, 4
    %v1028 = vrot.slane %v72, 5
    %v1029 = vsel %vm945, %v1027, %v1028
    %v1030 = vrot.slane %v907, 5
    %v1031 = vrot.slane %v1030, 4
    %v1032 = vrot.slane %v50, 5
    %v1033 = vsel %vm945, %v1031, %v1032
    %v1034 = vrot.slane %v1032, 4
    %v1035 = vrot.slane %v73, 5
    %v1036 = vsel %vm945, %v1034, %v1035
    %v1037 = vrot.slane %v908, 5
    %v1038 = vrot.slane %v1037, 4
    %v1039 = vrot.slane %v52, 5
    %v1040 = vsel %vm945, %v1038, %v1039
    %v1041 = vrot.slane %v1039, 4
    %v1042 = vrot.slane %v74, 5
    %v1043 = vsel %vm945, %v1041, %v1042
    %v1044 = vrot.slane %v909, 5
    %v1045 = vrot.slane %v1044, 4
    %v1046 = vrot.slane %v54, 5
    %v1047 = vsel %vm945, %v1045, %v1046
    %v1048 = vrot.slane %v1046, 4
    %v1049 = vrot.slane %v75, 5
    %v1050 = vsel %vm945, %v1048, %v1049
    %v1051 = vrot.slane %v910, 5
    %v1052 = vrot.slane %v1051, 4
    %v1053 = vrot.slane %v56, 5
    %v1054 = vsel %vm945, %v1052, %v1053
    %v1055 = vrot.slane %v1053, 4
    %v1056 = vrot.slane %v76, 5
    %v1057 = vsel %vm945, %v1055, %v1056
    %v1058 = vld [vmem:[%s2 + $0x20] sm:$0xf]
    %v1059 = vld [vmem:[%s2 + $0x24] sm:$0xf]
    %v1060 = vld [vmem:[%s2 + $0x28] sm:$0xf]
    %v1061 = vld [vmem:[%s2 + $0x2c] sm:$0xf]
    %v1062 = vunpack.c.l.b16 %v949
    %v1063 = vunpack.c.l.b16 %v952
    %v1064 = vunpack.c.l.b16 %v956
    %v1065 = vunpack.c.l.b16 %v959
    %v1066 = vunpack.c.l.b16 %v963
    %v1067 = vunpack.c.l.b16 %v966
    %v1068 = vunpack.c.l.b16 %v970
    %v1069 = vunpack.c.l.b16 %v973
    %v1070 = vunpack.c.l.b16 %v977
    %v1071 = vunpack.c.l.b16 %v980
    %v1072 = vunpack.c.l.b16 %v984
    %v1073 = vunpack.c.l.b16 %v987
    %v1074 = vunpack.c.l.b16 %v991
    %v1075 = vunpack.c.l.b16 %v994
    %v1076 = vunpack.c.l.b16 %v998
    %v1077 = vunpack.c.l.b16 %v1001
    %v1078 = vunpack.c.l.b16 %v1005
    %v1079 = vunpack.c.l.b16 %v1008
    %v1080 = vunpack.c.l.b16 %v1012
    %v1081 = vunpack.c.l.b16 %v1015
    %v1082 = vunpack.c.l.b16 %v1019
    %v1083 = vunpack.c.l.b16 %v1022
    %v1084 = vunpack.c.l.b16 %v1026
    %v1085 = vunpack.c.l.b16 %v1029
    %v1086 = vunpack.c.l.b16 %v1033
    %v1087 = vunpack.c.l.b16 %v1036
    %v1088 = vunpack.c.l.b16 %v1040
    %v1089 = vunpack.c.l.b16 %v1043
    %v1090 = vunpack.c.l.b16 %v1047
    %v1091 = vunpack.c.l.b16 %v1050
    %v1092 = vunpack.c.l.b16 %v1054
    %v1093 = vunpack.c.l.b16 %v1057
    %v1094 = vpack.c.b16 %v1063, %v1062
    %v1095 = vpack.c.b16 %v1065, %v1064
    %v1096 = vpack.c.b16 %v1067, %v1066
    %v1097 = vpack.c.b16 %v1069, %v1068
    %v1098 = vpack.c.b16 %v1071, %v1070
    %v1099 = vpack.c.b16 %v1073, %v1072
    %v1100 = vpack.c.b16 %v1075, %v1074
    %v1101 = vpack.c.b16 %v1077, %v1076
    %v1102 = vpack.c.b16 %v1079, %v1078
    %v1103 = vpack.c.b16 %v1081, %v1080
    %v1104 = vpack.c.b16 %v1083, %v1082
    %v1105 = vpack.c.b16 %v1085, %v1084
    %v1106 = vpack.c.b16 %v1087, %v1086
    %v1107 = vpack.c.b16 %v1089, %v1088
    %v1108 = vpack.c.b16 %v1091, %v1090
    %v1109 = vpack.c.b16 %v1093, %v1092
    %v1114 = vunpack.c.l.b16 %v1058
    %v1115 = vunpack.c.l.b16 %v1059
    %v1116 = vunpack.c.l.b16 %v1060
    %v1117 = vunpack.c.l.b16 %v1061
    %v1118 = vpack.c.b16 %v1115, %v1114
    %v1119 = vpack.c.b16 %v1117, %v1116
    %v1123 = vsel %vm528, %v1094, 0
    %v1126 = vsel %vm528, %v1095, 0
    %v1129 = vsel %vm528, %v1096, 0
    %v1132 = vsel %vm528, %v1097, 0
    %v1135 = vsel %vm528, %v1098, 0
    %v1138 = vsel %vm528, %v1099, 0
    %v1141 = vsel %vm528, %v1100, 0
    %v1144 = vsel %vm528, %v1101, 0
    %v1147 = vsel %vm528, %v1102, 0
    %v1150 = vsel %vm528, %v1103, 0
    %v1153 = vsel %vm528, %v1104, 0
    %v1156 = vsel %vm528, %v1105, 0
    %v1159 = vsel %vm528, %v1106, 0
    %v1162 = vsel %vm528, %v1107, 0
    %v1165 = vsel %vm528, %v1108, 0
    %v1168 = vsel %vm528, %v1109, 0
    %1170 = vmatpush.bf16.msra.mxu0 0
    %1171 = vmatpush.bf16.msra.mxu0 0
    %1172 = vmatpush.bf16.msra.mxu0 0
    %1173 = vmatpush.bf16.msra.mxu0 0
    %1174 = vmatpush.bf16.msra.mxu0 0
    %1175 = vmatpush.bf16.msra.mxu0 0
    %1176 = vmatpush.bf16.msra.mxu0 %v1119
    %1177 = vmatpush.bf16.msra.mxu0 %v1118
    %1178 = vmatmul.bf16.gmra.mxu0 %v1123
    %v1179 = vpop.f32.mrf.mxu0
    %v1180 = vadd.f32 0.0, %v1179
    %v1181 = vpop.f32.mrf.mxu0
    %v1182 = vadd.f32 0.0, %v1181
    %1183 = vmatmul.bf16.gmra.mxu0 %v1126
    %v1184 = vpop.f32.mrf.mxu0
    %v1185 = vadd.f32 0.0, %v1184
    %v1186 = vpop.f32.mrf.mxu0
    %v1187 = vadd.f32 0.0, %v1186
    %1188 = vmatmul.bf16.gmra.mxu0 %v1129
    %v1189 = vpop.f32.mrf.mxu0
    %v1190 = vadd.f32 0.0, %v1189
    %v1191 = vpop.f32.mrf.mxu0
    %v1192 = vadd.f32 0.0, %v1191
    %1193 = vmatmul.bf16.gmra.mxu0 %v1132
    %v1194 = vpop.f32.mrf.mxu0
    %v1195 = vadd.f32 0.0, %v1194
    %v1196 = vpop.f32.mrf.mxu0
    %v1197 = vadd.f32 0.0, %v1196
    %1198 = vmatmul.bf16.gmra.mxu0 %v1135
    %v1199 = vpop.f32.mrf.mxu0
    %v1200 = vadd.f32 0.0, %v1199
    %v1201 = vpop.f32.mrf.mxu0
    %v1202 = vadd.f32 0.0, %v1201
    %1203 = vmatmul.bf16.gmra.mxu0 %v1138
    %v1204 = vpop.f32.mrf.mxu0
    %v1205 = vadd.f32 0.0, %v1204
    %v1206 = vpop.f32.mrf.mxu0
    %v1207 = vadd.f32 0.0, %v1206
    %1208 = vmatmul.bf16.gmra.mxu0 %v1141
    %v1209 = vpop.f32.mrf.mxu0
    %v1210 = vadd.f32 0.0, %v1209
    %v1211 = vpop.f32.mrf.mxu0
    %v1212 = vadd.f32 0.0, %v1211
    %1213 = vmatmul.bf16.gmra.mxu0 %v1144
    %v1214 = vpop.f32.mrf.mxu0
    %v1215 = vadd.f32 0.0, %v1214
    %v1216 = vpop.f32.mrf.mxu0
    %v1217 = vadd.f32 0.0, %v1216
    %1218 = vmatmul.bf16.gmra.mxu0 %v1147
    %v1219 = vpop.f32.mrf.mxu0
    %v1220 = vadd.f32 0.0, %v1219
    %v1221 = vpop.f32.mrf.mxu0
    %v1222 = vadd.f32 0.0, %v1221
    %1223 = vmatmul.bf16.gmra.mxu0 %v1150
    %v1224 = vpop.f32.mrf.mxu0
    %v1225 = vadd.f32 0.0, %v1224
    %v1226 = vpop.f32.mrf.mxu0
    %v1227 = vadd.f32 0.0, %v1226
    %1228 = vmatmul.bf16.gmra.mxu0 %v1153
    %v1229 = vpop.f32.mrf.mxu0
    %v1230 = vadd.f32 0.0, %v1229
    %v1231 = vpop.f32.mrf.mxu0
    %v1232 = vadd.f32 0.0, %v1231
    %1233 = vmatmul.bf16.gmra.mxu0 %v1156
    %v1234 = vpop.f32.mrf.mxu0
    %v1235 = vadd.f32 0.0, %v1234
    %v1236 = vpop.f32.mrf.mxu0
    %v1237 = vadd.f32 0.0, %v1236
    %1238 = vmatmul.bf16.gmra.mxu0 %v1159
    %v1239 = vpop.f32.mrf.mxu0
    %v1240 = vadd.f32 0.0, %v1239
    %v1241 = vpop.f32.mrf.mxu0
    %v1242 = vadd.f32 0.0, %v1241
    %1243 = vmatmul.bf16.gmra.mxu0 %v1162
    %v1244 = vpop.f32.mrf.mxu0
    %v1245 = vadd.f32 0.0, %v1244
    %v1246 = vpop.f32.mrf.mxu0
    %v1247 = vadd.f32 0.0, %v1246
    %1248 = vmatmul.bf16.gmra.mxu0 %v1165
    %v1249 = vpop.f32.mrf.mxu0
    %v1250 = vadd.f32 0.0, %v1249
    %v1251 = vpop.f32.mrf.mxu0
    %v1252 = vadd.f32 0.0, %v1251
    %1253 = vmatmul.bf16.gmra.mxu0 %v1168
    %v1254 = vpop.f32.mrf.mxu0
    %v1255 = vadd.f32 0.0, %v1254
    %v1256 = vpop.f32.mrf.mxu0
    %v1257 = vadd.f32 0.0, %v1256
    %1258 = vdwg.mxu0
    %v1259 = vadd.f32 %v816, %v1180
    %v1260 = vadd.f32 %v818, %v1182
    %v1261 = vadd.f32 %v821, %v1185
    %v1262 = vadd.f32 %v823, %v1187
    %v1263 = vadd.f32 %v826, %v1190
    %v1264 = vadd.f32 %v828, %v1192
    %v1265 = vadd.f32 %v831, %v1195
    %v1266 = vadd.f32 %v833, %v1197
    %v1267 = vadd.f32 %v836, %v1200
    %v1268 = vadd.f32 %v838, %v1202
    %v1269 = vadd.f32 %v841, %v1205
    %v1270 = vadd.f32 %v843, %v1207
    %v1271 = vadd.f32 %v846, %v1210
    %v1272 = vadd.f32 %v848, %v1212
    %v1273 = vadd.f32 %v851, %v1215
    %v1274 = vadd.f32 %v853, %v1217
    %v1275 = vadd.f32 %v856, %v1220
    %v1276 = vadd.f32 %v858, %v1222
    %v1277 = vadd.f32 %v861, %v1225
    %v1278 = vadd.f32 %v863, %v1227
    %v1279 = vadd.f32 %v866, %v1230
    %v1280 = vadd.f32 %v868, %v1232
    %v1281 = vadd.f32 %v871, %v1235
    %v1282 = vadd.f32 %v873, %v1237
    %v1283 = vadd.f32 %v876, %v1240
    %v1284 = vadd.f32 %v878, %v1242
    %v1285 = vadd.f32 %v881, %v1245
    %v1286 = vadd.f32 %v883, %v1247
    %v1287 = vadd.f32 %v886, %v1250
    %v1288 = vadd.f32 %v888, %v1252
    %v1289 = vadd.f32 %v891, %v1255
    %v1290 = vadd.f32 %v893, %v1257
    %v1291 = vld [vmem:[%s0 + $0x8] sm:$0x3]
    %v1292 = vld [vmem:[%s0 + $0x14] sm:$0x3]
    %v1293 = vld [vmem:[%s0 + $0x20] sm:$0x3]
    %v1294 = vld [vmem:[%s0 + $0x2c] sm:$0x3]
    %v1295 = vld [vmem:[%s0 + $0x38] sm:$0x3]
    %v1296 = vld [vmem:[%s0 + $0x44] sm:$0x3]
    %v1297 = vld [vmem:[%s0 + $0x50] sm:$0x3]
    %v1298 = vld [vmem:[%s0 + $0x5c] sm:$0x3]
    %v1299 = vld [vmem:[%s0 + $0x68] sm:$0x3]
    %v1300 = vld [vmem:[%s0 + $0x74] sm:$0x3]
    %v1301 = vld [vmem:[%s0 + $0x80] sm:$0x3]
    %v1302 = vld [vmem:[%s0 + $0x8c] sm:$0x3]
    %v1303 = vld [vmem:[%s0 + $0x98] sm:$0x3]
    %v1304 = vld [vmem:[%s0 + $0xa4] sm:$0x3]
    %v1305 = vld [vmem:[%s0 + $0xb0] sm:$0x3]
    %v1306 = vld [vmem:[%s0 + $0xbc] sm:$0x3]
    %vm1307 = vsmask.f32 2304
    %vm1308 = vsmask.f32 6416
    %vm1309 = vmor %vm1307, %vm1308
    %v1311 = vshrl.u32 %v895, 16
    %v1313 = vrot.slane %v1311, 5
    %v1314 = vshll.u32 %v895, 16
    %v1316 = vrot.slane %v1314, 6
    %v1317 = vor.u32 %v1313, %v1316
    %v1318 = vrot.slane %v1317, 4
    %v1319 = vrot.slane %v94, 5
    %v1320 = vrot.slane %v90, 6
    %v1321 = vor.u32 %v1319, %v1320
    %v1322 = vsel %vm1309, %v1318, %v1321
    %v1323 = vrot.slane %v1321, 4
    %v1325 = vshrl.u32 %v1291, 16
    %v1327 = vrot.slane %v1325, 5
    %v1328 = vshll.u32 %v1291, 16
    %v1330 = vrot.slane %v1328, 6
    %v1331 = vor.u32 %v1327, %v1330
    %v1332 = vsel %vm1309, %v1323, %v1331
    %v1334 = vshrl.u32 %v896, 16
    %v1336 = vrot.slane %v1334, 5
    %v1337 = vshll.u32 %v896, 16
    %v1339 = vrot.slane %v1337, 6
    %v1340 = vor.u32 %v1336, %v1339
    %v1341 = vrot.slane %v1340, 4
    %v1342 = vrot.slane %v118, 5
    %v1343 = vrot.slane %v114, 6
    %v1344 = vor.u32 %v1342, %v1343
    %v1345 = vsel %vm1309, %v1341, %v1344
    %v1346 = vrot.slane %v1344, 4
    %v1348 = vshrl.u32 %v1292, 16
    %v1350 = vrot.slane %v1348, 5
    %v1351 = vshll.u32 %v1292, 16
    %v1353 = vrot.slane %v1351, 6
    %v1354 = vor.u32 %v1350, %v1353
    %v1355 = vsel %vm1309, %v1346, %v1354
    %v1357 = vshrl.u32 %v897, 16
    %v1359 = vrot.slane %v1357, 5
    %v1360 = vshll.u32 %v897, 16
    %v1362 = vrot.slane %v1360, 6
    %v1363 = vor.u32 %v1359, %v1362
    %v1364 = vrot.slane %v1363, 4
    %v1365 = vrot.slane %v142, 5
    %v1366 = vrot.slane %v138, 6
    %v1367 = vor.u32 %v1365, %v1366
    %v1368 = vsel %vm1309, %v1364, %v1367
    %v1369 = vrot.slane %v1367, 4
    %v1371 = vshrl.u32 %v1293, 16
    %v1373 = vrot.slane %v1371, 5
    %v1374 = vshll.u32 %v1293, 16
    %v1376 = vrot.slane %v1374, 6
    %v1377 = vor.u32 %v1373, %v1376
    %v1378 = vsel %vm1309, %v1369, %v1377
    %v1380 = vshrl.u32 %v898, 16
    %v1382 = vrot.slane %v1380, 5
    %v1383 = vshll.u32 %v898, 16
    %v1385 = vrot.slane %v1383, 6
    %v1386 = vor.u32 %v1382, %v1385
    %v1387 = vrot.slane %v1386, 4
    %v1388 = vrot.slane %v166, 5
    %v1389 = vrot.slane %v162, 6
    %v1390 = vor.u32 %v1388, %v1389
    %v1391 = vsel %vm1309, %v1387, %v1390
    %v1392 = vrot.slane %v1390, 4
    %v1394 = vshrl.u32 %v1294, 16
    %v1396 = vrot.slane %v1394, 5
    %v1397 = vshll.u32 %v1294, 16
    %v1399 = vrot.slane %v1397, 6
    %v1400 = vor.u32 %v1396, %v1399
    %v1401 = vsel %vm1309, %v1392, %v1400
    %v1403 = vshrl.u32 %v899, 16
    %v1405 = vrot.slane %v1403, 5
    %v1406 = vshll.u32 %v899, 16
    %v1408 = vrot.slane %v1406, 6
    %v1409 = vor.u32 %v1405, %v1408
    %v1410 = vrot.slane %v1409, 4
    %v1411 = vrot.slane %v190, 5
    %v1412 = vrot.slane %v186, 6
    %v1413 = vor.u32 %v1411, %v1412
    %v1414 = vsel %vm1309, %v1410, %v1413
    %v1415 = vrot.slane %v1413, 4
    %v1417 = vshrl.u32 %v1295, 16
    %v1419 = vrot.slane %v1417, 5
    %v1420 = vshll.u32 %v1295, 16
    %v1422 = vrot.slane %v1420, 6
    %v1423 = vor.u32 %v1419, %v1422
    %v1424 = vsel %vm1309, %v1415, %v1423
    %v1426 = vshrl.u32 %v900, 16
    %v1428 = vrot.slane %v1426, 5
    %v1429 = vshll.u32 %v900, 16
    %v1431 = vrot.slane %v1429, 6
    %v1432 = vor.u32 %v1428, %v1431
    %v1433 = vrot.slane %v1432, 4
    %v1434 = vrot.slane %v214, 5
    %v1435 = vrot.slane %v210, 6
    %v1436 = vor.u32 %v1434, %v1435
    %v1437 = vsel %vm1309, %v1433, %v1436
    %v1438 = vrot.slane %v1436, 4
    %v1440 = vshrl.u32 %v1296, 16
    %v1442 = vrot.slane %v1440, 5
    %v1443 = vshll.u32 %v1296, 16
    %v1445 = vrot.slane %v1443, 6
    %v1446 = vor.u32 %v1442, %v1445
    %v1447 = vsel %vm1309, %v1438, %v1446
    %v1449 = vshrl.u32 %v901, 16
    %v1451 = vrot.slane %v1449, 5
    %v1452 = vshll.u32 %v901, 16
    %v1454 = vrot.slane %v1452, 6
    %v1455 = vor.u32 %v1451, %v1454
    %v1456 = vrot.slane %v1455, 4
    %v1457 = vrot.slane %v238, 5
    %v1458 = vrot.slane %v234, 6
    %v1459 = vor.u32 %v1457, %v1458
    %v1460 = vsel %vm1309, %v1456, %v1459
    %v1461 = vrot.slane %v1459, 4
    %v1463 = vshrl.u32 %v1297, 16
    %v1465 = vrot.slane %v1463, 5
    %v1466 = vshll.u32 %v1297, 16
    %v1468 = vrot.slane %v1466, 6
    %v1469 = vor.u32 %v1465, %v1468
    %v1470 = vsel %vm1309, %v1461, %v1469
    %v1472 = vshrl.u32 %v902, 16
    %v1474 = vrot.slane %v1472, 5
    %v1475 = vshll.u32 %v902, 16
    %v1477 = vrot.slane %v1475, 6
    %v1478 = vor.u32 %v1474, %v1477
    %v1479 = vrot.slane %v1478, 4
    %v1480 = vrot.slane %v262, 5
    %v1481 = vrot.slane %v258, 6
    %v1482 = vor.u32 %v1480, %v1481
    %v1483 = vsel %vm1309, %v1479, %v1482
    %v1484 = vrot.slane %v1482, 4
    %v1486 = vshrl.u32 %v1298, 16
    %v1488 = vrot.slane %v1486, 5
    %v1489 = vshll.u32 %v1298, 16
    %v1491 = vrot.slane %v1489, 6
    %v1492 = vor.u32 %v1488, %v1491
    %v1493 = vsel %vm1309, %v1484, %v1492
    %v1495 = vshrl.u32 %v903, 16
    %v1497 = vrot.slane %v1495, 5
    %v1498 = vshll.u32 %v903, 16
    %v1500 = vrot.slane %v1498, 6
    %v1501 = vor.u32 %v1497, %v1500
    %v1502 = vrot.slane %v1501, 4
    %v1503 = vrot.slane %v286, 5
    %v1504 = vrot.slane %v282, 6
    %v1505 = vor.u32 %v1503, %v1504
    %v1506 = vsel %vm1309, %v1502, %v1505
    %v1507 = vrot.slane %v1505, 4
    %v1509 = vshrl.u32 %v1299, 16
    %v1511 = vrot.slane %v1509, 5
    %v1512 = vshll.u32 %v1299, 16
    %v1514 = vrot.slane %v1512, 6
    %v1515 = vor.u32 %v1511, %v1514
    %v1516 = vsel %vm1309, %v1507, %v1515
    %v1518 = vshrl.u32 %v904, 16
    %v1520 = vrot.slane %v1518, 5
    %v1521 = vshll.u32 %v904, 16
    %v1523 = vrot.slane %v1521, 6
    %v1524 = vor.u32 %v1520, %v1523
    %v1525 = vrot.slane %v1524, 4
    %v1526 = vrot.slane %v310, 5
    %v1527 = vrot.slane %v306, 6
    %v1528 = vor.u32 %v1526, %v1527
    %v1529 = vsel %vm1309, %v1525, %v1528
    %v1530 = vrot.slane %v1528, 4
    %v1532 = vshrl.u32 %v1300, 16
    %v1534 = vrot.slane %v1532, 5
    %v1535 = vshll.u32 %v1300, 16
    %v1537 = vrot.slane %v1535, 6
    %v1538 = vor.u32 %v1534, %v1537
    %v1539 = vsel %vm1309, %v1530, %v1538
    %v1541 = vshrl.u32 %v905, 16
    %v1543 = vrot.slane %v1541, 5
    %v1544 = vshll.u32 %v905, 16
    %v1546 = vrot.slane %v1544, 6
    %v1547 = vor.u32 %v1543, %v1546
    %v1548 = vrot.slane %v1547, 4
    %v1549 = vrot.slane %v334, 5
    %v1550 = vrot.slane %v330, 6
    %v1551 = vor.u32 %v1549, %v1550
    %v1552 = vsel %vm1309, %v1548, %v1551
    %v1553 = vrot.slane %v1551, 4
    %v1555 = vshrl.u32 %v1301, 16
    %v1557 = vrot.slane %v1555, 5
    %v1558 = vshll.u32 %v1301, 16
    %v1560 = vrot.slane %v1558, 6
    %v1561 = vor.u32 %v1557, %v1560
    %v1562 = vsel %vm1309, %v1553, %v1561
    %v1564 = vshrl.u32 %v906, 16
    %v1566 = vrot.slane %v1564, 5
    %v1567 = vshll.u32 %v906, 16
    %v1569 = vrot.slane %v1567, 6
    %v1570 = vor.u32 %v1566, %v1569
    %v1571 = vrot.slane %v1570, 4
    %v1572 = vrot.slane %v358, 5
    %v1573 = vrot.slane %v354, 6
    %v1574 = vor.u32 %v1572, %v1573
    %v1575 = vsel %vm1309, %v1571, %v1574
    %v1576 = vrot.slane %v1574, 4
    %v1578 = vshrl.u32 %v1302, 16
    %v1580 = vrot.slane %v1578, 5
    %v1581 = vshll.u32 %v1302, 16
    %v1583 = vrot.slane %v1581, 6
    %v1584 = vor.u32 %v1580, %v1583
    %v1585 = vsel %vm1309, %v1576, %v1584
    %v1587 = vshrl.u32 %v907, 16
    %v1589 = vrot.slane %v1587, 5
    %v1590 = vshll.u32 %v907, 16
    %v1592 = vrot.slane %v1590, 6
    %v1593 = vor.u32 %v1589, %v1592
    %v1594 = vrot.slane %v1593, 4
    %v1595 = vrot.slane %v382, 5
    %v1596 = vrot.slane %v378, 6
    %v1597 = vor.u32 %v1595, %v1596
    %v1598 = vsel %vm1309, %v1594, %v1597
    %v1599 = vrot.slane %v1597, 4
    %v1601 = vshrl.u32 %v1303, 16
    %v1603 = vrot.slane %v1601, 5
    %v1604 = vshll.u32 %v1303, 16
    %v1606 = vrot.slane %v1604, 6
    %v1607 = vor.u32 %v1603, %v1606
    %v1608 = vsel %vm1309, %v1599, %v1607
    %v1610 = vshrl.u32 %v908, 16
    %v1612 = vrot.slane %v1610, 5
    %v1613 = vshll.u32 %v908, 16
    %v1615 = vrot.slane %v1613, 6
    %v1616 = vor.u32 %v1612, %v1615
    %v1617 = vrot.slane %v1616, 4
    %v1618 = vrot.slane %v406, 5
    %v1619 = vrot.slane %v402, 6
    %v1620 = vor.u32 %v1618, %v1619
    %v1621 = vsel %vm1309, %v1617, %v1620
    %v1622 = vrot.slane %v1620, 4
    %v1624 = vshrl.u32 %v1304, 16
    %v1626 = vrot.slane %v1624, 5
    %v1627 = vshll.u32 %v1304, 16
    %v1629 = vrot.slane %v1627, 6
    %v1630 = vor.u32 %v1626, %v1629
    %v1631 = vsel %vm1309, %v1622, %v1630
    %v1633 = vshrl.u32 %v909, 16
    %v1635 = vrot.slane %v1633, 5
    %v1636 = vshll.u32 %v909, 16
    %v1638 = vrot.slane %v1636, 6
    %v1639 = vor.u32 %v1635, %v1638
    %v1640 = vrot.slane %v1639, 4
    %v1641 = vrot.slane %v430, 5
    %v1642 = vrot.slane %v426, 6
    %v1643 = vor.u32 %v1641, %v1642
    %v1644 = vsel %vm1309, %v1640, %v1643
    %v1645 = vrot.slane %v1643, 4
    %v1647 = vshrl.u32 %v1305, 16
    %v1649 = vrot.slane %v1647, 5
    %v1650 = vshll.u32 %v1305, 16
    %v1652 = vrot.slane %v1650, 6
    %v1653 = vor.u32 %v1649, %v1652
    %v1654 = vsel %vm1309, %v1645, %v1653
    %v1656 = vshrl.u32 %v910, 16
    %v1658 = vrot.slane %v1656, 5
    %v1659 = vshll.u32 %v910, 16
    %v1661 = vrot.slane %v1659, 6
    %v1662 = vor.u32 %v1658, %v1661
    %v1663 = vrot.slane %v1662, 4
    %v1664 = vrot.slane %v454, 5
    %v1665 = vrot.slane %v450, 6
    %v1666 = vor.u32 %v1664, %v1665
    %v1667 = vsel %vm1309, %v1663, %v1666
    %v1668 = vrot.slane %v1666, 4
    %v1670 = vshrl.u32 %v1306, 16
    %v1672 = vrot.slane %v1670, 5
    %v1673 = vshll.u32 %v1306, 16
    %v1675 = vrot.slane %v1673, 6
    %v1676 = vor.u32 %v1672, %v1675
    %v1677 = vsel %vm1309, %v1668, %v1676
    %v1678 = vld [vmem:[%s2 + $0x30] sm:$0xf]
    %v1679 = vld [vmem:[%s2 + $0x34] sm:$0xf]
    %v1680 = vld [vmem:[%s2 + $0x38] sm:$0xf]
    %v1681 = vld [vmem:[%s2 + $0x3c] sm:$0xf]
    %v1682 = vunpack.c.l.b16 %v1322
    %v1683 = vunpack.c.l.b16 %v1332
    %v1684 = vunpack.c.l.b16 %v1345
    %v1685 = vunpack.c.l.b16 %v1355
    %v1686 = vunpack.c.l.b16 %v1368
    %v1687 = vunpack.c.l.b16 %v1378
    %v1688 = vunpack.c.l.b16 %v1391
    %v1689 = vunpack.c.l.b16 %v1401
    %v1690 = vunpack.c.l.b16 %v1414
    %v1691 = vunpack.c.l.b16 %v1424
    %v1692 = vunpack.c.l.b16 %v1437
    %v1693 = vunpack.c.l.b16 %v1447
    %v1694 = vunpack.c.l.b16 %v1460
    %v1695 = vunpack.c.l.b16 %v1470
    %v1696 = vunpack.c.l.b16 %v1483
    %v1697 = vunpack.c.l.b16 %v1493
    %v1698 = vunpack.c.l.b16 %v1506
    %v1699 = vunpack.c.l.b16 %v1516
    %v1700 = vunpack.c.l.b16 %v1529
    %v1701 = vunpack.c.l.b16 %v1539
    %v1702 = vunpack.c.l.b16 %v1552
    %v1703 = vunpack.c.l.b16 %v1562
    %v1704 = vunpack.c.l.b16 %v1575
    %v1705 = vunpack.c.l.b16 %v1585
    %v1706 = vunpack.c.l.b16 %v1598
    %v1707 = vunpack.c.l.b16 %v1608
    %v1708 = vunpack.c.l.b16 %v1621
    %v1709 = vunpack.c.l.b16 %v1631
    %v1710 = vunpack.c.l.b16 %v1644
    %v1711 = vunpack.c.l.b16 %v1654
    %v1712 = vunpack.c.l.b16 %v1667
    %v1713 = vunpack.c.l.b16 %v1677
    %v1714 = vpack.c.b16 %v1683, %v1682
    %v1715 = vpack.c.b16 %v1685, %v1684
    %v1716 = vpack.c.b16 %v1687, %v1686
    %v1717 = vpack.c.b16 %v1689, %v1688
    %v1718 = vpack.c.b16 %v1691, %v1690
    %v1719 = vpack.c.b16 %v1693, %v1692
    %v1720 = vpack.c.b16 %v1695, %v1694
    %v1721 = vpack.c.b16 %v1697, %v1696
    %v1722 = vpack.c.b16 %v1699, %v1698
    %v1723 = vpack.c.b16 %v1701, %v1700
    %v1724 = vpack.c.b16 %v1703, %v1702
    %v1725 = vpack.c.b16 %v1705, %v1704
    %v1726 = vpack.c.b16 %v1707, %v1706
    %v1727 = vpack.c.b16 %v1709, %v1708
    %v1728 = vpack.c.b16 %v1711, %v1710
    %v1729 = vpack.c.b16 %v1713, %v1712
    %v1734 = vunpack.c.l.b16 %v1678
    %v1735 = vunpack.c.l.b16 %v1679
    %v1736 = vunpack.c.l.b16 %v1680
    %v1737 = vunpack.c.l.b16 %v1681
    %v1738 = vpack.c.b16 %v1735, %v1734
    %v1739 = vpack.c.b16 %v1737, %v1736
    %v1743 = vsel %vm528, %v1714, 0
    %v1746 = vsel %vm528, %v1715, 0
    %v1749 = vsel %vm528, %v1716, 0
    %v1752 = vsel %vm528, %v1717, 0
    %v1755 = vsel %vm528, %v1718, 0
    %v1758 = vsel %vm528, %v1719, 0
    %v1761 = vsel %vm528, %v1720, 0
    %v1764 = vsel %vm528, %v1721, 0
    %v1767 = vsel %vm528, %v1722, 0
    %v1770 = vsel %vm528, %v1723, 0
    %v1773 = vsel %vm528, %v1724, 0
    %v1776 = vsel %vm528, %v1725, 0
    %v1779 = vsel %vm528, %v1726, 0
    %v1782 = vsel %vm528, %v1727, 0
    %v1785 = vsel %vm528, %v1728, 0
    %v1788 = vsel %vm528, %v1729, 0
    %1790 = vmatpush.bf16.msra.mxu0 0
    %1791 = vmatpush.bf16.msra.mxu0 0
    %1792 = vmatpush.bf16.msra.mxu0 0
    %1793 = vmatpush.bf16.msra.mxu0 0
    %1794 = vmatpush.bf16.msra.mxu0 0
    %1795 = vmatpush.bf16.msra.mxu0 0
    %1796 = vmatpush.bf16.msra.mxu0 %v1739
    %1797 = vmatpush.bf16.msra.mxu0 %v1738
    %1798 = vmatmul.bf16.gmra.mxu0 %v1743
    %v1799 = vpop.f32.mrf.mxu0
    %v1800 = vadd.f32 0.0, %v1799
    %v1801 = vpop.f32.mrf.mxu0
    %v1802 = vadd.f32 0.0, %v1801
    %1803 = vmatmul.bf16.gmra.mxu0 %v1746
    %v1804 = vpop.f32.mrf.mxu0
    %v1805 = vadd.f32 0.0, %v1804
    %v1806 = vpop.f32.mrf.mxu0
    %v1807 = vadd.f32 0.0, %v1806
    %1808 = vmatmul.bf16.gmra.mxu0 %v1749
    %v1809 = vpop.f32.mrf.mxu0
    %v1810 = vadd.f32 0.0, %v1809
    %v1811 = vpop.f32.mrf.mxu0
    %v1812 = vadd.f32 0.0, %v1811
    %1813 = vmatmul.bf16.gmra.mxu0 %v1752
    %v1814 = vpop.f32.mrf.mxu0
    %v1815 = vadd.f32 0.0, %v1814
    %v1816 = vpop.f32.mrf.mxu0
    %v1817 = vadd.f32 0.0, %v1816
    %1818 = vmatmul.bf16.gmra.mxu0 %v1755
    %v1819 = vpop.f32.mrf.mxu0
    %v1820 = vadd.f32 0.0, %v1819
    %v1821 = vpop.f32.mrf.mxu0
    %v1822 = vadd.f32 0.0, %v1821
    %1823 = vmatmul.bf16.gmra.mxu0 %v1758
    %v1824 = vpop.f32.mrf.mxu0
    %v1825 = vadd.f32 0.0, %v1824
    %v1826 = vpop.f32.mrf.mxu0
    %v1827 = vadd.f32 0.0, %v1826
    %1828 = vmatmul.bf16.gmra.mxu0 %v1761
    %v1829 = vpop.f32.mrf.mxu0
    %v1830 = vadd.f32 0.0, %v1829
    %v1831 = vpop.f32.mrf.mxu0
    %v1832 = vadd.f32 0.0, %v1831
    %1833 = vmatmul.bf16.gmra.mxu0 %v1764
    %v1834 = vpop.f32.mrf.mxu0
    %v1835 = vadd.f32 0.0, %v1834
    %v1836 = vpop.f32.mrf.mxu0
    %v1837 = vadd.f32 0.0, %v1836
    %1838 = vmatmul.bf16.gmra.mxu0 %v1767
    %v1839 = vpop.f32.mrf.mxu0
    %v1840 = vadd.f32 0.0, %v1839
    %v1841 = vpop.f32.mrf.mxu0
    %v1842 = vadd.f32 0.0, %v1841
    %1843 = vmatmul.bf16.gmra.mxu0 %v1770
    %v1844 = vpop.f32.mrf.mxu0
    %v1845 = vadd.f32 0.0, %v1844
    %v1846 = vpop.f32.mrf.mxu0
    %v1847 = vadd.f32 0.0, %v1846
    %1848 = vmatmul.bf16.gmra.mxu0 %v1773
    %v1849 = vpop.f32.mrf.mxu0
    %v1850 = vadd.f32 0.0, %v1849
    %v1851 = vpop.f32.mrf.mxu0
    %v1852 = vadd.f32 0.0, %v1851
    %1853 = vmatmul.bf16.gmra.mxu0 %v1776
    %v1854 = vpop.f32.mrf.mxu0
    %v1855 = vadd.f32 0.0, %v1854
    %v1856 = vpop.f32.mrf.mxu0
    %v1857 = vadd.f32 0.0, %v1856
    %1858 = vmatmul.bf16.gmra.mxu0 %v1779
    %v1859 = vpop.f32.mrf.mxu0
    %v1860 = vadd.f32 0.0, %v1859
    %v1861 = vpop.f32.mrf.mxu0
    %v1862 = vadd.f32 0.0, %v1861
    %1863 = vmatmul.bf16.gmra.mxu0 %v1782
    %v1864 = vpop.f32.mrf.mxu0
    %v1865 = vadd.f32 0.0, %v1864
    %v1866 = vpop.f32.mrf.mxu0
    %v1867 = vadd.f32 0.0, %v1866
    %1868 = vmatmul.bf16.gmra.mxu0 %v1785
    %v1869 = vpop.f32.mrf.mxu0
    %v1870 = vadd.f32 0.0, %v1869
    %v1871 = vpop.f32.mrf.mxu0
    %v1872 = vadd.f32 0.0, %v1871
    %1873 = vmatmul.bf16.gmra.mxu0 %v1788
    %v1874 = vpop.f32.mrf.mxu0
    %v1875 = vadd.f32 0.0, %v1874
    %v1876 = vpop.f32.mrf.mxu0
    %v1877 = vadd.f32 0.0, %v1876
    %1878 = vdwg.mxu0
    %v1879 = vadd.f32 %v1259, %v1800
    %v1880 = vadd.f32 %v1260, %v1802
    %v1881 = vadd.f32 %v1261, %v1805
    %v1882 = vadd.f32 %v1262, %v1807
    %v1883 = vadd.f32 %v1263, %v1810
    %v1884 = vadd.f32 %v1264, %v1812
    %v1885 = vadd.f32 %v1265, %v1815
    %v1886 = vadd.f32 %v1266, %v1817
    %v1887 = vadd.f32 %v1267, %v1820
    %v1888 = vadd.f32 %v1268, %v1822
    %v1889 = vadd.f32 %v1269, %v1825
    %v1890 = vadd.f32 %v1270, %v1827
    %v1891 = vadd.f32 %v1271, %v1830
    %v1892 = vadd.f32 %v1272, %v1832
    %v1893 = vadd.f32 %v1273, %v1835
    %v1894 = vadd.f32 %v1274, %v1837
    %v1895 = vadd.f32 %v1275, %v1840
    %v1896 = vadd.f32 %v1276, %v1842
    %v1897 = vadd.f32 %v1277, %v1845
    %v1898 = vadd.f32 %v1278, %v1847
    %v1899 = vadd.f32 %v1279, %v1850
    %v1900 = vadd.f32 %v1280, %v1852
    %v1901 = vadd.f32 %v1281, %v1855
    %v1902 = vadd.f32 %v1282, %v1857
    %v1903 = vadd.f32 %v1283, %v1860
    %v1904 = vadd.f32 %v1284, %v1862
    %v1905 = vadd.f32 %v1285, %v1865
    %v1906 = vadd.f32 %v1286, %v1867
    %v1907 = vadd.f32 %v1287, %v1870
    %v1908 = vadd.f32 %v1288, %v1872
    %v1909 = vadd.f32 %v1289, %v1875
    %v1910 = vadd.f32 %v1290, %v1877
    %v1911 = vld [vmem:[%s0] sm:$0xc]
    %v1912 = vld [vmem:[%s0 + $0xc] sm:$0xc]
    %v1913 = vld [vmem:[%s0 + $0x18] sm:$0xc]
    %v1914 = vld [vmem:[%s0 + $0x24] sm:$0xc]
    %v1915 = vld [vmem:[%s0 + $0x30] sm:$0xc]
    %v1916 = vld [vmem:[%s0 + $0x3c] sm:$0xc]
    %v1917 = vld [vmem:[%s0 + $0x48] sm:$0xc]
    %v1918 = vld [vmem:[%s0 + $0x54] sm:$0xc]
    %v1919 = vld [vmem:[%s0 + $0x60] sm:$0xc]
    %v1920 = vld [vmem:[%s0 + $0x6c] sm:$0xc]
    %v1921 = vld [vmem:[%s0 + $0x78] sm:$0xc]
    %v1922 = vld [vmem:[%s0 + $0x84] sm:$0xc]
    %v1923 = vld [vmem:[%s0 + $0x90] sm:$0xc]
    %v1924 = vld [vmem:[%s0 + $0x9c] sm:$0xc]
    %v1925 = vld [vmem:[%s0 + $0xa8] sm:$0xc]
    %v1926 = vld [vmem:[%s0 + $0xb4] sm:$0xc]
    %vm1959 = vcmask 1041408
    %vm1960 = vcmask 1045508
    %vm1961 = vmor %vm1959, %vm1960
    %v1962 = vrot.slane %v1911, 6
    %v1963 = vrot.slane %v1962, 4
    %v1964 = vrot.slane %v26, 6
    %v1965 = vsel %vm1961, %v1963, %v1964
    %v1966 = vrot.slane %v1964, 4
    %v1967 = vrot.slane %v1291, 6
    %v1968 = vsel %vm1961, %v1966, %v1967
    %v1969 = vrot.slane %v1912, 6
    %v1970 = vrot.slane %v1969, 4
    %v1971 = vrot.slane %v28, 6
    %v1972 = vsel %vm1961, %v1970, %v1971
    %v1973 = vrot.slane %v1971, 4
    %v1974 = vrot.slane %v1292, 6
    %v1975 = vsel %vm1961, %v1973, %v1974
    %v1976 = vrot.slane %v1913, 6
    %v1977 = vrot.slane %v1976, 4
    %v1978 = vrot.slane %v30, 6
    %v1979 = vsel %vm1961, %v1977, %v1978
    %v1980 = vrot.slane %v1978, 4
    %v1981 = vrot.slane %v1293, 6
    %v1982 = vsel %vm1961, %v1980, %v1981
    %v1983 = vrot.slane %v1914, 6
    %v1984 = vrot.slane %v1983, 4
    %v1985 = vrot.slane %v32, 6
    %v1986 = vsel %vm1961, %v1984, %v1985
    %v1987 = vrot.slane %v1985, 4
    %v1988 = vrot.slane %v1294, 6
    %v1989 = vsel %vm1961, %v1987, %v1988
    %v1990 = vrot.slane %v1915, 6
    %v1991 = vrot.slane %v1990, 4
    %v1992 = vrot.slane %v34, 6
    %v1993 = vsel %vm1961, %v1991, %v1992
    %v1994 = vrot.slane %v1992, 4
    %v1995 = vrot.slane %v1295, 6
    %v1996 = vsel %vm1961, %v1994, %v1995
    %v1997 = vrot.slane %v1916, 6
    %v1998 = vrot.slane %v1997, 4
    %v1999 = vrot.slane %v36, 6
    %v2000 = vsel %vm1961, %v1998, %v1999
    %v2001 = vrot.slane %v1999, 4
    %v2002 = vrot.slane %v1296, 6
    %v2003 = vsel %vm1961, %v2001, %v2002
    %v2004 = vrot.slane %v1917, 6
    %v2005 = vrot.slane %v2004, 4
    %v2006 = vrot.slane %v38, 6
    %v2007 = vsel %vm1961, %v2005, %v2006
    %v2008 = vrot.slane %v2006, 4
    %v2009 = vrot.slane %v1297, 6
    %v2010 = vsel %vm1961, %v2008, %v2009
    %v2011 = vrot.slane %v1918, 6
    %v2012 = vrot.slane %v2011, 4
    %v2013 = vrot.slane %v40, 6
    %v2014 = vsel %vm1961, %v2012, %v2013
    %v2015 = vrot.slane %v2013, 4
    %v2016 = vrot.slane %v1298, 6
    %v2017 = vsel %vm1961, %v2015, %v2016
    %v2018 = vrot.slane %v1919, 6
    %v2019 = vrot.slane %v2018, 4
    %v2020 = vrot.slane %v42, 6
    %v2021 = vsel %vm1961, %v2019, %v2020
    %v2022 = vrot.slane %v2020, 4
    %v2023 = vrot.slane %v1299, 6
    %v2024 = vsel %vm1961, %v2022, %v2023
    %v2025 = vrot.slane %v1920, 6
    %v2026 = vrot.slane %v2025, 4
    %v2027 = vrot.slane %v44, 6
    %v2028 = vsel %vm1961, %v2026, %v2027
    %v2029 = vrot.slane %v2027, 4
    %v2030 = vrot.slane %v1300, 6
    %v2031 = vsel %vm1961, %v2029, %v2030
    %v2032 = vrot.slane %v1921, 6
    %v2033 = vrot.slane %v2032, 4
    %v2034 = vrot.slane %v46, 6
    %v2035 = vsel %vm1961, %v2033, %v2034
    %v2036 = vrot.slane %v2034, 4
    %v2037 = vrot.slane %v1301, 6
    %v2038 = vsel %vm1961, %v2036, %v2037
    %v2039 = vrot.slane %v1922, 6
    %v2040 = vrot.slane %v2039, 4
    %v2041 = vrot.slane %v48, 6
    %v2042 = vsel %vm1961, %v2040, %v2041
    %v2043 = vrot.slane %v2041, 4
    %v2044 = vrot.slane %v1302, 6
    %v2045 = vsel %vm1961, %v2043, %v2044
    %v2046 = vrot.slane %v1923, 6
    %v2047 = vrot.slane %v2046, 4
    %v2048 = vrot.slane %v50, 6
    %v2049 = vsel %vm1961, %v2047, %v2048
    %v2050 = vrot.slane %v2048, 4
    %v2051 = vrot.slane %v1303, 6
    %v2052 = vsel %vm1961, %v2050, %v2051
    %v2053 = vrot.slane %v1924, 6
    %v2054 = vrot.slane %v2053, 4
    %v2055 = vrot.slane %v52, 6
    %v2056 = vsel %vm1961, %v2054, %v2055
    %v2057 = vrot.slane %v2055, 4
    %v2058 = vrot.slane %v1304, 6
    %v2059 = vsel %vm1961, %v2057, %v2058
    %v2060 = vrot.slane %v1925, 6
    %v2061 = vrot.slane %v2060, 4
    %v2062 = vrot.slane %v54, 6
    %v2063 = vsel %vm1961, %v2061, %v2062
    %v2064 = vrot.slane %v2062, 4
    %v2065 = vrot.slane %v1305, 6
    %v2066 = vsel %vm1961, %v2064, %v2065
    %v2067 = vrot.slane %v1926, 6
    %v2068 = vrot.slane %v2067, 4
    %v2069 = vrot.slane %v56, 6
    %v2070 = vsel %vm1961, %v2068, %v2069
    %v2071 = vrot.slane %v2069, 4
    %v2072 = vrot.slane %v1306, 6
    %v2073 = vsel %vm1961, %v2071, %v2072
    %v2074 = vld [vmem:[%s2 + $0x40] sm:$0xf]
    %v2075 = vld [vmem:[%s2 + $0x44] sm:$0xf]
    %v2076 = vld [vmem:[%s2 + $0x48] sm:$0xf]
    %v2077 = vld [vmem:[%s2 + $0x4c] sm:$0xf]
    %v2078 = vunpack.c.l.b16 %v1965
    %v2079 = vunpack.c.l.b16 %v1968
    %v2080 = vunpack.c.l.b16 %v1972
    %v2081 = vunpack.c.l.b16 %v1975
    %v2082 = vunpack.c.l.b16 %v1979
    %v2083 = vunpack.c.l.b16 %v1982
    %v2084 = vunpack.c.l.b16 %v1986
    %v2085 = vunpack.c.l.b16 %v1989
    %v2086 = vunpack.c.l.b16 %v1993
    %v2087 = vunpack.c.l.b16 %v1996
    %v2088 = vunpack.c.l.b16 %v2000
    %v2089 = vunpack.c.l.b16 %v2003
    %v2090 = vunpack.c.l.b16 %v2007
    %v2091 = vunpack.c.l.b16 %v2010
    %v2092 = vunpack.c.l.b16 %v2014
    %v2093 = vunpack.c.l.b16 %v2017
    %v2094 = vunpack.c.l.b16 %v2021
    %v2095 = vunpack.c.l.b16 %v2024
    %v2096 = vunpack.c.l.b16 %v2028
    %v2097 = vunpack.c.l.b16 %v2031
    %v2098 = vunpack.c.l.b16 %v2035
    %v2099 = vunpack.c.l.b16 %v2038
    %v2100 = vunpack.c.l.b16 %v2042
    %v2101 = vunpack.c.l.b16 %v2045
    %v2102 = vunpack.c.l.b16 %v2049
    %v2103 = vunpack.c.l.b16 %v2052
    %v2104 = vunpack.c.l.b16 %v2056
    %v2105 = vunpack.c.l.b16 %v2059
    %v2106 = vunpack.c.l.b16 %v2063
    %v2107 = vunpack.c.l.b16 %v2066
    %v2108 = vunpack.c.l.b16 %v2070
    %v2109 = vunpack.c.l.b16 %v2073
    %v2110 = vpack.c.b16 %v2079, %v2078
    %v2111 = vpack.c.b16 %v2081, %v2080
    %v2112 = vpack.c.b16 %v2083, %v2082
    %v2113 = vpack.c.b16 %v2085, %v2084
    %v2114 = vpack.c.b16 %v2087, %v2086
    %v2115 = vpack.c.b16 %v2089, %v2088
    %v2116 = vpack.c.b16 %v2091, %v2090
    %v2117 = vpack.c.b16 %v2093, %v2092
    %v2118 = vpack.c.b16 %v2095, %v2094
    %v2119 = vpack.c.b16 %v2097, %v2096
    %v2120 = vpack.c.b16 %v2099, %v2098
    %v2121 = vpack.c.b16 %v2101, %v2100
    %v2122 = vpack.c.b16 %v2103, %v2102
    %v2123 = vpack.c.b16 %v2105, %v2104
    %v2124 = vpack.c.b16 %v2107, %v2106
    %v2125 = vpack.c.b16 %v2109, %v2108
    %v2130 = vunpack.c.l.b16 %v2074
    %v2131 = vunpack.c.l.b16 %v2075
    %v2132 = vunpack.c.l.b16 %v2076
    %v2133 = vunpack.c.l.b16 %v2077
    %v2134 = vpack.c.b16 %v2131, %v2130
    %v2135 = vpack.c.b16 %v2133, %v2132
    %v2139 = vsel %vm528, %v2110, 0
    %v2142 = vsel %vm528, %v2111, 0
    %v2145 = vsel %vm528, %v2112, 0
    %v2148 = vsel %vm528, %v2113, 0
    %v2151 = vsel %vm528, %v2114, 0
    %v2154 = vsel %vm528, %v2115, 0
    %v2157 = vsel %vm528, %v2116, 0
    %v2160 = vsel %vm528, %v2117, 0
    %v2163 = vsel %vm528, %v2118, 0
    %v2166 = vsel %vm528, %v2119, 0
    %v2169 = vsel %vm528, %v2120, 0
    %v2172 = vsel %vm528, %v2121, 0
    %v2175 = vsel %vm528, %v2122, 0
    %v2178 = vsel %vm528, %v2123, 0
    %v2181 = vsel %vm528, %v2124, 0
    %v2184 = vsel %vm528, %v2125, 0
    %2186 = vmatpush.bf16.msra.mxu0 0
    %2187 = vmatpush.bf16.msra.mxu0 0
    %2188 = vmatpush.bf16.msra.mxu0 0
    %2189 = vmatpush.bf16.msra.mxu0 0
    %2190 = vmatpush.bf16.msra.mxu0 0
    %2191 = vmatpush.bf16.msra.mxu0 0
    %2192 = vmatpush.bf16.msra.mxu0 %v2135
    %2193 = vmatpush.bf16.msra.mxu0 %v2134
    %2194 = vmatmul.bf16.gmra.mxu0 %v2139
    %v2195 = vpop.f32.mrf.mxu0
    %v2196 = vadd.f32 0.0, %v2195
    %v2197 = vpop.f32.mrf.mxu0
    %v2198 = vadd.f32 0.0, %v2197
    %2199 = vmatmul.bf16.gmra.mxu0 %v2142
    %v2200 = vpop.f32.mrf.mxu0
    %v2201 = vadd.f32 0.0, %v2200
    %v2202 = vpop.f32.mrf.mxu0
    %v2203 = vadd.f32 0.0, %v2202
    %2204 = vmatmul.bf16.gmra.mxu0 %v2145
    %v2205 = vpop.f32.mrf.mxu0
    %v2206 = vadd.f32 0.0, %v2205
    %v2207 = vpop.f32.mrf.mxu0
    %v2208 = vadd.f32 0.0, %v2207
    %2209 = vmatmul.bf16.gmra.mxu0 %v2148
    %v2210 = vpop.f32.mrf.mxu0
    %v2211 = vadd.f32 0.0, %v2210
    %v2212 = vpop.f32.mrf.mxu0
    %v2213 = vadd.f32 0.0, %v2212
    %2214 = vmatmul.bf16.gmra.mxu0 %v2151
    %v2215 = vpop.f32.mrf.mxu0
    %v2216 = vadd.f32 0.0, %v2215
    %v2217 = vpop.f32.mrf.mxu0
    %v2218 = vadd.f32 0.0, %v2217
    %2219 = vmatmul.bf16.gmra.mxu0 %v2154
    %v2220 = vpop.f32.mrf.mxu0
    %v2221 = vadd.f32 0.0, %v2220
    %v2222 = vpop.f32.mrf.mxu0
    %v2223 = vadd.f32 0.0, %v2222
    %2224 = vmatmul.bf16.gmra.mxu0 %v2157
    %v2225 = vpop.f32.mrf.mxu0
    %v2226 = vadd.f32 0.0, %v2225
    %v2227 = vpop.f32.mrf.mxu0
    %v2228 = vadd.f32 0.0, %v2227
    %2229 = vmatmul.bf16.gmra.mxu0 %v2160
    %v2230 = vpop.f32.mrf.mxu0
    %v2231 = vadd.f32 0.0, %v2230
    %v2232 = vpop.f32.mrf.mxu0
    %v2233 = vadd.f32 0.0, %v2232
    %2234 = vmatmul.bf16.gmra.mxu0 %v2163
    %v2235 = vpop.f32.mrf.mxu0
    %v2236 = vadd.f32 0.0, %v2235
    %v2237 = vpop.f32.mrf.mxu0
    %v2238 = vadd.f32 0.0, %v2237
    %2239 = vmatmul.bf16.gmra.mxu0 %v2166
    %v2240 = vpop.f32.mrf.mxu0
    %v2241 = vadd.f32 0.0, %v2240
    %v2242 = vpop.f32.mrf.mxu0
    %v2243 = vadd.f32 0.0, %v2242
    %2244 = vmatmul.bf16.gmra.mxu0 %v2169
    %v2245 = vpop.f32.mrf.mxu0
    %v2246 = vadd.f32 0.0, %v2245
    %v2247 = vpop.f32.mrf.mxu0
    %v2248 = vadd.f32 0.0, %v2247
    %2249 = vmatmul.bf16.gmra.mxu0 %v2172
    %v2250 = vpop.f32.mrf.mxu0
    %v2251 = vadd.f32 0.0, %v2250
    %v2252 = vpop.f32.mrf.mxu0
    %v2253 = vadd.f32 0.0, %v2252
    %2254 = vmatmul.bf16.gmra.mxu0 %v2175
    %v2255 = vpop.f32.mrf.mxu0
    %v2256 = vadd.f32 0.0, %v2255
    %v2257 = vpop.f32.mrf.mxu0
    %v2258 = vadd.f32 0.0, %v2257
    %2259 = vmatmul.bf16.gmra.mxu0 %v2178
    %v2260 = vpop.f32.mrf.mxu0
    %v2261 = vadd.f32 0.0, %v2260
    %v2262 = vpop.f32.mrf.mxu0
    %v2263 = vadd.f32 0.0, %v2262
    %2264 = vmatmul.bf16.gmra.mxu0 %v2181
    %v2265 = vpop.f32.mrf.mxu0
    %v2266 = vadd.f32 0.0, %v2265
    %v2267 = vpop.f32.mrf.mxu0
    %v2268 = vadd.f32 0.0, %v2267
    %2269 = vmatmul.bf16.gmra.mxu0 %v2184
    %v2270 = vpop.f32.mrf.mxu0
    %v2271 = vadd.f32 0.0, %v2270
    %v2272 = vpop.f32.mrf.mxu0
    %v2273 = vadd.f32 0.0, %v2272
    %2274 = vdwg.mxu0
    %v2275 = vadd.f32 %v1879, %v2196
    %v2276 = vadd.f32 %v1880, %v2198
    %v2277 = vadd.f32 %v1881, %v2201
    %v2278 = vadd.f32 %v1882, %v2203
    %v2279 = vadd.f32 %v1883, %v2206
    %v2280 = vadd.f32 %v1884, %v2208
    %v2281 = vadd.f32 %v1885, %v2211
    %v2282 = vadd.f32 %v1886, %v2213
    %v2283 = vadd.f32 %v1887, %v2216
    %v2284 = vadd.f32 %v1888, %v2218
    %v2285 = vadd.f32 %v1889, %v2221
    %v2286 = vadd.f32 %v1890, %v2223
    %v2287 = vadd.f32 %v1891, %v2226
    %v2288 = vadd.f32 %v1892, %v2228
    %v2289 = vadd.f32 %v1893, %v2231
    %v2290 = vadd.f32 %v1894, %v2233
    %v2291 = vadd.f32 %v1895, %v2236
    %v2292 = vadd.f32 %v1896, %v2238
    %v2293 = vadd.f32 %v1897, %v2241
    %v2294 = vadd.f32 %v1898, %v2243
    %v2295 = vadd.f32 %v1899, %v2246
    %v2296 = vadd.f32 %v1900, %v2248
    %v2297 = vadd.f32 %v1901, %v2251
    %v2298 = vadd.f32 %v1902, %v2253
    %v2299 = vadd.f32 %v1903, %v2256
    %v2300 = vadd.f32 %v1904, %v2258
    %v2301 = vadd.f32 %v1905, %v2261
    %v2302 = vadd.f32 %v1906, %v2263
    %v2303 = vadd.f32 %v1907, %v2266
    %v2304 = vadd.f32 %v1908, %v2268
    %v2305 = vadd.f32 %v1909, %v2271
    %v2306 = vadd.f32 %v1910, %v2273
    %v2307 = vld [vmem:[%s3] sm:$0x1]
    %v2309 = vperm.slane %v2307, 0
    %v2311 = vadd.f32 %v2275, %v2309
    %v2312 = vadd.f32 %v2276, %v2309
    %v2313 = vadd.f32 %v2277, %v2309
    %v2314 = vadd.f32 %v2278, %v2309
    %v2315 = vadd.f32 %v2279, %v2309
    %v2316 = vadd.f32 %v2280, %v2309
    %v2317 = vadd.f32 %v2281, %v2309
    %v2318 = vadd.f32 %v2282, %v2309
    %v2319 = vadd.f32 %v2283, %v2309
    %v2320 = vadd.f32 %v2284, %v2309
    %v2321 = vadd.f32 %v2285, %v2309
    %v2322 = vadd.f32 %v2286, %v2309
    %v2323 = vadd.f32 %v2287, %v2309
    %v2324 = vadd.f32 %v2288, %v2309
    %v2325 = vadd.f32 %v2289, %v2309
    %v2326 = vadd.f32 %v2290, %v2309
    %v2327 = vadd.f32 %v2291, %v2309
    %v2328 = vadd.f32 %v2292, %v2309
    %v2329 = vadd.f32 %v2293, %v2309
    %v2330 = vadd.f32 %v2294, %v2309
    %v2331 = vadd.f32 %v2295, %v2309
    %v2332 = vadd.f32 %v2296, %v2309
    %v2333 = vadd.f32 %v2297, %v2309
    %v2334 = vadd.f32 %v2298, %v2309
    %v2335 = vadd.f32 %v2299, %v2309
    %v2336 = vadd.f32 %v2300, %v2309
    %v2337 = vadd.f32 %v2301, %v2309
    %v2338 = vadd.f32 %v2302, %v2309
    %v2339 = vadd.f32 %v2303, %v2309
    %v2340 = vadd.f32 %v2304, %v2309
    %v2341 = vadd.f32 %v2305, %v2309
    %v2342 = vadd.f32 %v2306, %v2309
    %v2343 = vmax.f32 %v2311, 0.0
    %v2344 = vmax.f32 %v2312, 0.0
    %v2345 = vmax.f32 %v2313, 0.0
    %v2346 = vmax.f32 %v2314, 0.0
    %v2347 = vmax.f32 %v2315, 0.0
    %v2348 = vmax.f32 %v2316, 0.0
    %v2349 = vmax.f32 %v2317, 0.0
    %v2350 = vmax.f32 %v2318, 0.0
    %v2351 = vmax.f32 %v2319, 0.0
    %v2352 = vmax.f32 %v2320, 0.0
    %v2353 = vmax.f32 %v2321, 0.0
    %v2354 = vmax.f32 %v2322, 0.0
    %v2355 = vmax.f32 %v2323, 0.0
    %v2356 = vmax.f32 %v2324, 0.0
    %v2357 = vmax.f32 %v2325, 0.0
    %v2358 = vmax.f32 %v2326, 0.0
    %v2359 = vmax.f32 %v2327, 0.0
    %v2360 = vmax.f32 %v2328, 0.0
    %v2361 = vmax.f32 %v2329, 0.0
    %v2362 = vmax.f32 %v2330, 0.0
    %v2363 = vmax.f32 %v2331, 0.0
    %v2364 = vmax.f32 %v2332, 0.0
    %v2365 = vmax.f32 %v2333, 0.0
    %v2366 = vmax.f32 %v2334, 0.0
    %v2367 = vmax.f32 %v2335, 0.0
    %v2368 = vmax.f32 %v2336, 0.0
    %v2369 = vmax.f32 %v2337, 0.0
    %v2370 = vmax.f32 %v2338, 0.0
    %v2371 = vmax.f32 %v2339, 0.0
    %v2372 = vmax.f32 %v2340, 0.0
    %v2373 = vmax.f32 %v2341, 0.0
    %v2374 = vmax.f32 %v2342, 0.0
    %v2375 = vld [vmem:[%s1] sm:$0xff]
    %v2376 = vld [vmem:[%s1 + $0x8] sm:$0xff]
    %v2377 = vmul.f32 %v2343, %v2375
    %v2378 = vmul.f32 %v2344, %v2376
    %v2379 = vmul.f32 %v2345, %v2375
    %v2380 = vmul.f32 %v2346, %v2376
    %v2381 = vmul.f32 %v2347, %v2375
    %v2382 = vmul.f32 %v2348, %v2376
    %v2383 = vmul.f32 %v2349, %v2375
    %v2384 = vmul.f32 %v2350, %v2376
    %v2385 = vmul.f32 %v2351, %v2375
    %v2386 = vmul.f32 %v2352, %v2376
    %v2387 = vmul.f32 %v2353, %v2375
    %v2388 = vmul.f32 %v2354, %v2376
    %v2389 = vmul.f32 %v2355, %v2375
    %v2390 = vmul.f32 %v2356, %v2376
    %v2391 = vmul.f32 %v2357, %v2375
    %v2392 = vmul.f32 %v2358, %v2376
    %v2393 = vmul.f32 %v2359, %v2375
    %v2394 = vmul.f32 %v2360, %v2376
    %v2395 = vmul.f32 %v2361, %v2375
    %v2396 = vmul.f32 %v2362, %v2376
    %v2397 = vmul.f32 %v2363, %v2375
    %v2398 = vmul.f32 %v2364, %v2376
    %v2399 = vmul.f32 %v2365, %v2375
    %v2400 = vmul.f32 %v2366, %v2376
    %v2401 = vmul.f32 %v2367, %v2375
    %v2402 = vmul.f32 %v2368, %v2376
    %v2403 = vmul.f32 %v2369, %v2375
    %v2404 = vmul.f32 %v2370, %v2376
    %v2405 = vmul.f32 %v2371, %v2375
    %v2406 = vmul.f32 %v2372, %v2376
    %v2407 = vmul.f32 %v2373, %v2375
    %v2408 = vmul.f32 %v2374, %v2376
    %v2409 = vmax.f32 %v2377, %v2378
    %v2410 = vrot.slane %v2409, 4
    %v2411 = vmax.f32 %v2409, %v2410
    %v2412 = vrot.slane %v2411, 2
    %v2413 = vmax.f32 %v2411, %v2412
    %v2414 = vrot.slane %v2413, 1
    %v2415 = vmax.f32 %v2413, %v2414
    %v2416 = vmax.f32 %v2379, %v2380
    %v2417 = vrot.slane %v2416, 4
    %v2418 = vmax.f32 %v2416, %v2417
    %v2419 = vrot.slane %v2418, 2
    %v2420 = vmax.f32 %v2418, %v2419
    %v2421 = vrot.slane %v2420, 1
    %v2422 = vmax.f32 %v2420, %v2421
    %v2423 = vmax.f32 %v2381, %v2382
    %v2424 = vrot.slane %v2423, 4
    %v2425 = vmax.f32 %v2423, %v2424
    %v2426 = vrot.slane %v2425, 2
    %v2427 = vmax.f32 %v2425, %v2426
    %v2428 = vrot.slane %v2427, 1
    %v2429 = vmax.f32 %v2427, %v2428
    %v2430 = vmax.f32 %v2383, %v2384
    %v2431 = vrot.slane %v2430, 4
    %v2432 = vmax.f32 %v2430, %v2431
    %v2433 = vrot.slane %v2432, 2
    %v2434 = vmax.f32 %v2432, %v2433
    %v2435 = vrot.slane %v2434, 1
    %v2436 = vmax.f32 %v2434, %v2435
    %v2437 = vmax.f32 %v2385, %v2386
    %v2438 = vrot.slane %v2437, 4
    %v2439 = vmax.f32 %v2437, %v2438
    %v2440 = vrot.slane %v2439, 2
    %v2441 = vmax.f32 %v2439, %v2440
    %v2442 = vrot.slane %v2441, 1
    %v2443 = vmax.f32 %v2441, %v2442
    %v2444 = vmax.f32 %v2387, %v2388
    %v2445 = vrot.slane %v2444, 4
    %v2446 = vmax.f32 %v2444, %v2445
    %v2447 = vrot.slane %v2446, 2
    %v2448 = vmax.f32 %v2446, %v2447
    %v2449 = vrot.slane %v2448, 1
    %v2450 = vmax.f32 %v2448, %v2449
    %v2451 = vmax.f32 %v2389, %v2390
    %v2452 = vrot.slane %v2451, 4
    %v2453 = vmax.f32 %v2451, %v2452
    %v2454 = vrot.slane %v2453, 2
    %v2455 = vmax.f32 %v2453, %v2454
    %v2456 = vrot.slane %v2455, 1
    %v2457 = vmax.f32 %v2455, %v2456
    %v2458 = vmax.f32 %v2391, %v2392
    %v2459 = vrot.slane %v2458, 4
    %v2460 = vmax.f32 %v2458, %v2459
    %v2461 = vrot.slane %v2460, 2
    %v2462 = vmax.f32 %v2460, %v2461
    %v2463 = vrot.slane %v2462, 1
    %v2464 = vmax.f32 %v2462, %v2463
    %v2465 = vmax.f32 %v2393, %v2394
    %v2466 = vrot.slane %v2465, 4
    %v2467 = vmax.f32 %v2465, %v2466
    %v2468 = vrot.slane %v2467, 2
    %v2469 = vmax.f32 %v2467, %v2468
    %v2470 = vrot.slane %v2469, 1
    %v2471 = vmax.f32 %v2469, %v2470
    %v2472 = vmax.f32 %v2395, %v2396
    %v2473 = vrot.slane %v2472, 4
    %v2474 = vmax.f32 %v2472, %v2473
    %v2475 = vrot.slane %v2474, 2
    %v2476 = vmax.f32 %v2474, %v2475
    %v2477 = vrot.slane %v2476, 1
    %v2478 = vmax.f32 %v2476, %v2477
    %v2479 = vmax.f32 %v2397, %v2398
    %v2480 = vrot.slane %v2479, 4
    %v2481 = vmax.f32 %v2479, %v2480
    %v2482 = vrot.slane %v2481, 2
    %v2483 = vmax.f32 %v2481, %v2482
    %v2484 = vrot.slane %v2483, 1
    %v2485 = vmax.f32 %v2483, %v2484
    %v2486 = vmax.f32 %v2399, %v2400
    %v2487 = vrot.slane %v2486, 4
    %v2488 = vmax.f32 %v2486, %v2487
    %v2489 = vrot.slane %v2488, 2
    %v2490 = vmax.f32 %v2488, %v2489
    %v2491 = vrot.slane %v2490, 1
    %v2492 = vmax.f32 %v2490, %v2491
    %v2493 = vmax.f32 %v2401, %v2402
    %v2494 = vrot.slane %v2493, 4
    %v2495 = vmax.f32 %v2493, %v2494
    %v2496 = vrot.slane %v2495, 2
    %v2497 = vmax.f32 %v2495, %v2496
    %v2498 = vrot.slane %v2497, 1
    %v2499 = vmax.f32 %v2497, %v2498
    %v2500 = vmax.f32 %v2403, %v2404
    %v2501 = vrot.slane %v2500, 4
    %v2502 = vmax.f32 %v2500, %v2501
    %v2503 = vrot.slane %v2502, 2
    %v2504 = vmax.f32 %v2502, %v2503
    %v2505 = vrot.slane %v2504, 1
    %v2506 = vmax.f32 %v2504, %v2505
    %v2507 = vmax.f32 %v2405, %v2406
    %v2508 = vrot.slane %v2507, 4
    %v2509 = vmax.f32 %v2507, %v2508
    %v2510 = vrot.slane %v2509, 2
    %v2511 = vmax.f32 %v2509, %v2510
    %v2512 = vrot.slane %v2511, 1
    %v2513 = vmax.f32 %v2511, %v2512
    %v2514 = vmax.f32 %v2407, %v2408
    %v2515 = vrot.slane %v2514, 4
    %v2516 = vmax.f32 %v2514, %v2515
    %v2517 = vrot.slane %v2516, 2
    %v2518 = vmax.f32 %v2516, %v2517
    %v2519 = vrot.slane %v2518, 1
    %v2520 = vmax.f32 %v2518, %v2519
    %v2521 = vld [vmem:[%s4] sm:$0xff]
    %v2522 = vld [vmem:[%s4 + $0x8] sm:$0xff]
    %v2523 = vld [vmem:[%s4 + $0x10] sm:$0xff]
    %v2524 = vld [vmem:[%s4 + $0x18] sm:$0xff]
    %v2525 = vld [vmem:[%s4 + $0x20] sm:$0xff]
    %v2526 = vld [vmem:[%s4 + $0x28] sm:$0xff]
    %v2527 = vld [vmem:[%s4 + $0x30] sm:$0xff]
    %v2528 = vld [vmem:[%s4 + $0x38] sm:$0xff]
    %v2529 = vld [vmem:[%s4 + $0x40] sm:$0xff]
    %v2530 = vld [vmem:[%s4 + $0x48] sm:$0xff]
    %v2531 = vld [vmem:[%s4 + $0x50] sm:$0xff]
    %v2532 = vld [vmem:[%s4 + $0x58] sm:$0xff]
    %v2533 = vld [vmem:[%s4 + $0x60] sm:$0xff]
    %v2534 = vld [vmem:[%s4 + $0x68] sm:$0xff]
    %v2535 = vld [vmem:[%s4 + $0x70] sm:$0xff]
    %v2536 = vld [vmem:[%s4 + $0x78] sm:$0xff]
    %v2537 = vld [vmem:[%s5] sm:$0x1]
    %v2539 = vperm.slane %v2537, 0
    %vm2557 = vcmask 1041409
    %v2558 = vsel %vm2557, %v2422, %v2415
    %vm2559 = vcmask 1042434
    %v2560 = vsel %vm2559, %v2429, %v2558
    %vm2561 = vcmask 1043459
    %v2562 = vsel %vm2561, %v2436, %v2560
    %vm2563 = vcmask 1044484
    %v2564 = vsel %vm2563, %v2443, %v2562
    %vm2565 = vcmask 1045509
    %v2566 = vsel %vm2565, %v2450, %v2564
    %vm2567 = vcmask 1046534
    %v2568 = vsel %vm2567, %v2457, %v2566
    %vm2569 = vcmask 1047559
    %v2570 = vsel %vm2569, %v2464, %v2568
    %v2571 = vsel %vm2557, %v2478, %v2471
    %v2572 = vsel %vm2559, %v2485, %v2571
    %v2573 = vsel %vm2561, %v2492, %v2572
    %v2574 = vsel %vm2563, %v2499, %v2573
    %v2575 = vsel %vm2565, %v2506, %v2574
    %v2576 = vsel %vm2567, %v2513, %v2575
    %v2577 = vsel %vm2569, %v2520, %v2576
    %2580 = vmatpush.msra.mxu0 %v2536
    %2581 = vmatpush.msra.mxu0 %v2535
    %2582 = vmatpush.msra.mxu0 %v2534
    %2583 = vmatpush.msra.mxu0 %v2533
    %2584 = vmatpush.msra.mxu0 %v2532
    %2585 = vmatpush.msra.mxu0 %v2531
    %2586 = vmatpush.msra.mxu0 %v2530
    %2587 = vmatpush.msra.mxu0 %v2529
    %2588 = vmatpush.msra.mxu0 %v2528
    %2589 = vmatpush.msra.mxu0 %v2527
    %2590 = vmatpush.msra.mxu0 %v2526
    %2591 = vmatpush.msra.mxu0 %v2525
    %2592 = vmatpush.msra.mxu0 %v2524
    %2593 = vmatpush.msra.mxu0 %v2523
    %2594 = vmatpush.msra.mxu0 %v2522
    %2595 = vmatpush.msra.mxu0 %v2521
    %2596 = vmatmul.f32.gmra.mxu0 %v2570
    %v2597 = vpop.f32.mrf.mxu0
    %v2598 = vadd.f32 %v2539, %v2597
    %2599 = vmatmul.f32.gmra.mxu0 %v2577
    %v2600 = vpop.f32.mrf.mxu0
    %v2601 = vadd.f32 %v2539, %v2600
    %2602 = vdwg.mxu0
    %2603 = vst [vmem:[#allocation2] sm:$0xff] %v2598
    %2604 = vst [vmem:[#allocation2 + $0x8] sm:$0xff] %v2601
    // Predicated region
    $region26: #{tpu_custom_call.1} parent=1 // pred_check
      _
    $region27: #{tpu_custom_call.1} parent=1 // pred_check_branch
      %2606 = sbr.rel (0) target = $region29
    $region28: #{tpu_custom_call.1} parent=1 // pred_region
      %2608 = vsyncadd [#allocation3], 0
      %s2609 = sshll.u32 [#allocation2], 4
      %s2610 = int_to_ptr.vmem [resolvable:$true] %s2609
      %s2611 = sshll.u32 %s6, 4
      %s2612 = int_to_ptr.hbm [resolvable:$true] %s2611
      %2617 = dma.vmem_to_hbm [thread:$0]  %s2610, 256, %s2612, [#allocation3], 128, 128, 8
    $region29: #{tpu_custom_call.1} parent=1 // pred_fallthru
      _
    // Predicated region
    $region30: #{tpu_custom_call.1} parent=1 // pred_check
      _
    $region31: #{tpu_custom_call.1} parent=1 // pred_check_branch
      %2619 = sbr.rel (0) target = $region33
    $region32: #{tpu_custom_call.1} parent=1 // pred_region
      %2621 = dma.done [#allocation3], 256
    $region33: #{tpu_custom_call.1} parent=1 // pred_fallthru
      _
    %2622 = vsyncpa [#allocation3], 1

</llo_original>
